<compile_context>
chip_gen: v7x
topology: tpu7x:2x2x1
jax: 0.10.0
libtpu: 0.0.40
codegen_flags: <defaults>
</compile_context>

<pallas_src>
import functools

import jax
import jax.numpy as jnp
from jax.experimental import pallas as pl
from jax.experimental.pallas import tpu as pltpu


def _round_up8(v):
    return (v + 7) // 8 * 8


# ----------------------------------------------------------------------------
# Fused GRU + Linear kernel (single program, whole problem resident in VMEM).
# ----------------------------------------------------------------------------
def _gru_fc_kernel(L, B, N, H, off_whh, off_wfc,
                   x_ref, w_ref, b_ref, o_ref, gx_ref, hs_ref):
    # x_ref : (L*B, N)           time-major input, flattened over (L, B)
    # w_ref : (rows, max(3H,N))  packed weights:
    #           [0:N      , 0:3H] = W_ih^T   (gate order [r, z, n])
    #           [off_whh:+H, 0:3H] = W_hh^T
    #           [off_wfc:+H, 0:N ] = W_fc^T
    # b_ref : (3, max(3H,N))     packed biases:
    #           row 0, 0:3H = b_ih + [b_hr, b_hz, 0]   (r/z hidden biases folded in)
    #           row 1, 0:H  = b_hn                      (must stay inside r*(...))
    #           row 2, 0:N  = b_fc
    # o_ref : (L*B, N)           output
    # gx_ref: (L*B, 3H) scratch  x-projection of all gates, all time steps
    # hs_ref: (L*B, H)  scratch  every hidden state (for the fused FC epilogue)
    H3 = 3 * H

    wih = w_ref[0:N, 0:H3]                         # (N, 3H)
    whh = w_ref[off_whh:off_whh + H, 0:H3]         # (H, 3H)
    wfc = w_ref[off_wfc:off_wfc + H, 0:N]          # (H, N)

    bih = b_ref[0:1, 0:H3]                         # (1, 3H) folded input+hidden(r,z) bias
    bhn = jnp.broadcast_to(b_ref[1:2, 0:H], (B, H))  # hoisted out of the time loop
    bfc = b_ref[2:3, 0:N]                          # (1, N)

    # 1) x-part of all gates for every time step in one MXU pass; stage to scratch
    #    so the unrolled loop doesn't keep (L*B, 3H) live in vregs.
    gx_ref[...] = (jnp.dot(x_ref[...], wih, preferred_element_type=jnp.float32)
                   + bih)

    # 2) Sequential recurrence over L time steps (static, fully unrolled; L is tiny).
    h = jnp.zeros((B, H), jnp.float32)
    for t in range(L):
        gxt = gx_ref[t * B:(t + 1) * B, :]                       # (B, 3H) static slice
        gh = jnp.dot(h, whh, preferred_element_type=jnp.float32)  # (B, 3H), no bias add
        rz = jax.nn.sigmoid(gxt[:, :2 * H] + gh[:, :2 * H])      # one EUP slab for r,z
        r = rz[:, :H]
        z = rz[:, H:]
        n = jnp.tanh(gxt[:, 2 * H:] + r * (gh[:, 2 * H:] + bhn))
        h = (1.0 - z) * n + z * h
        hs_ref[t * B:(t + 1) * B, :] = h                         # sublane-aligned store

    # 3) Fused final Linear on all hidden states at once.
    o_ref[...] = (jnp.dot(hs_ref[...], wfc, preferred_element_type=jnp.float32)
                  + bfc).astype(o_ref.dtype)


# ----------------------------------------------------------------------------
# One-time parameter preparation (transposes, bias folding, operand packing).
# ----------------------------------------------------------------------------
def prepare_params(params, num_nodes, hidden_size):
    N, H = num_nodes, hidden_size
    H3 = 3 * H
    C = max(H3, N)

    off_whh = _round_up8(N)
    off_wfc = off_whh + _round_up8(H)
    rows = off_wfc + _round_up8(H)

    w_pack = jnp.zeros((rows, C), jnp.float32)
    w_pack = w_pack.at[0:N, 0:H3].set(params["w_ih"].T)                   # (N, 3H)
    w_pack = w_pack.at[off_whh:off_whh + H, 0:H3].set(params["w_hh"].T)   # (H, 3H)
    w_pack = w_pack.at[off_wfc:off_wfc + H, 0:N].set(params["w_fc"].T)    # (H, N)

    b_ih, b_hh = params["b_ih"], params["b_hh"]
    # Fold b_hr, b_hz into the input bias; b_hn must remain separate (inside r*(...)).
    bih_folded = b_ih + jnp.concatenate([b_hh[:2 * H], jnp.zeros((H,), jnp.float32)])
    b_pack = jnp.zeros((3, C), jnp.float32)
    b_pack = b_pack.at[0, 0:H3].set(bih_folded)
    b_pack = b_pack.at[1, 0:H].set(b_hh[2 * H:])
    b_pack = b_pack.at[2, 0:N].set(params["b_fc"])

    meta = (N, H, off_whh, off_wfc)
    return w_pack, b_pack, meta


@functools.partial(jax.jit, static_argnums=(3,))
def gru_fc_pallas(x, w_pack, b_pack, meta):
    N, H, off_whh, off_wfc = meta
    L, B, Nx = x.shape
    assert Nx == N
    # Static slices hs_ref[t*B:(t+1)*B] assume sublane alignment of the batch rows.
    assert B % 8 == 0, "batch must be a multiple of 8 (sublane alignment of per-step tiles)"
    H3 = 3 * H

    x2d = x.reshape(L * B, N).astype(jnp.float32)   # time-major flatten (row t*B+b)

    out2d = pl.pallas_call(
        functools.partial(_gru_fc_kernel, L, B, N, H, off_whh, off_wfc),
        out_shape=jax.ShapeDtypeStruct((L * B, N), jnp.float32),
        in_specs=[pl.BlockSpec(memory_space=pltpu.MemorySpace.VMEM)] * 3,
        out_specs=pl.BlockSpec(memory_space=pltpu.MemorySpace.VMEM),
        scratch_shapes=[pltpu.VMEM((L * B, H3), jnp.float32),
                        pltpu.VMEM((L * B, H), jnp.float32)],
    )(x2d, w_pack, b_pack)

    return out2d.reshape(L, B, N)


# ----------------------------------------------------------------------------
# Pure-JAX reference (mirrors PyTorch nn.GRU + nn.Linear) for verification.
# ----------------------------------------------------------------------------
def ref_forward(x, params, hidden_size):
    H = hidden_size
    W_ih, W_hh = params["w_ih"], params["w_hh"]     # (3H, N), (3H, H)
    b_ih, b_hh = params["b_ih"], params["b_hh"]

    def step(h, xt):
        gx = xt @ W_ih.T + b_ih
        gh = h @ W_hh.T + b_hh
        r = jax.nn.sigmoid(gx[:, :H] + gh[:, :H])
        z = jax.nn.sigmoid(gx[:, H:2 * H] + gh[:, H:2 * H])
        n = jnp.tanh(gx[:, 2 * H:] + r * gh[:, 2 * H:])
        h = (1.0 - z) * n + z * h
        return h, h

    B = x.shape[1]
    h0 = jnp.zeros((B, H), jnp.float32)
    _, hs = jax.lax.scan(step, h0, x)               # scan over axis 0 (seq)
    return hs @ params["w_fc"].T + params["b_fc"]


def make_params(key, num_nodes, hidden_size):
    N, H = num_nodes, hidden_size
    ks = jax.random.split(key, 6)
    s = 0.2
    return dict(
        w_ih=s * jax.random.normal(ks[0], (3 * H, N), jnp.float32),
        w_hh=s * jax.random.normal(ks[1], (3 * H, H), jnp.float32),
        b_ih=s * jax.random.normal(ks[2], (3 * H,), jnp.float32),
        b_hh=s * jax.random.normal(ks[3], (3 * H,), jnp.float32),
        w_fc=s * jax.random.normal(ks[4], (N, H), jnp.float32),
        b_fc=s * jax.random.normal(ks[5], (N,), jnp.float32),
    )


if __name__ == "__main__":
    num_nodes, hidden_size = 8, 32
    L, B = 16, 8                       # x: (seq, batch, num_nodes), batch_first=False

    key = jax.random.PRNGKey(0)
    k_x, k_p = jax.random.split(key)
    x = jax.random.normal(k_x, (L, B, num_nodes), jnp.float32)
    params = make_params(k_p, num_nodes, hidden_size)

    # One-time parameter prep (transposes / bias folding / packing) off the call path.
    w_pack, b_pack, meta = prepare_params(params, num_nodes, hidden_size)

    out = gru_fc_pallas(x, w_pack, b_pack, meta)
    out = jax.block_until_ready(out)

    ref = jax.block_until_ready(ref_forward(x, params, hidden_size))
    assert out.shape == (L, B, num_nodes)
    assert jnp.allclose(out, ref, atol=1e-4, rtol=1e-4), (
        f"max abs err {jnp.max(jnp.abs(out - ref))}")

    print("KERNEL_OK")
</pallas_src>

<mosaic_0001>
module attributes {stable_mosaic.version = 11 : i64} {
  func.func @_gru_fc_kernel(%arg0: memref<128x8xf32, #tpu.memory_space<vmem>>, %arg1: memref<72x96xf32, #tpu.memory_space<vmem>>, %arg2: memref<3x96xf32, #tpu.memory_space<vmem>>, %arg3: memref<128x8xf32, #tpu.memory_space<vmem>>, %arg4: memref<128x96xf32, #tpu.memory_space<vmem>>, %arg5: memref<128x32xf32, #tpu.memory_space<vmem>>) attributes {dimension_semantics = [], scalar_prefetch = 0 : i64, scratch_operands = 2 : i64, tpu.core_type = #tpu.core_type<tc>} {
    %c0 = arith.constant 0 : index
    %c0_0 = arith.constant 0 : index
    %0 = vector.load %arg1[%c0, %c0_0] : memref<72x96xf32, #tpu.memory_space<vmem>>, vector<8x96xf32>
    %c8 = arith.constant 8 : index
    %c0_1 = arith.constant 0 : index
    %1 = vector.load %arg1[%c8, %c0_1] : memref<72x96xf32, #tpu.memory_space<vmem>>, vector<32x96xf32>
    %c40 = arith.constant 40 : index
    %c0_2 = arith.constant 0 : index
    %2 = vector.load %arg1[%c40, %c0_2] : memref<72x96xf32, #tpu.memory_space<vmem>>, vector<32x8xf32>
    %c0_3 = arith.constant 0 : index
    %c0_4 = arith.constant 0 : index
    %3 = vector.load %arg2[%c0_3, %c0_4] : memref<3x96xf32, #tpu.memory_space<vmem>>, vector<1x96xf32>
    %c1 = arith.constant 1 : index
    %c0_5 = arith.constant 0 : index
    %4 = vector.load %arg2[%c1, %c0_5] : memref<3x96xf32, #tpu.memory_space<vmem>>, vector<1x32xf32>
    %5 = vector.shape_cast %4 : vector<1x32xf32> to vector<1x32xf32>
    %6 = vector.broadcast %5 : vector<1x32xf32> to vector<8x32xf32>
    %c2 = arith.constant 2 : index
    %c0_6 = arith.constant 0 : index
    %7 = vector.load %arg2[%c2, %c0_6] : memref<3x96xf32, #tpu.memory_space<vmem>>, vector<1x8xf32>
    %c0_7 = arith.constant 0 : index
    %c0_8 = arith.constant 0 : index
    %8 = vector.load %arg0[%c0_7, %c0_8] : memref<128x8xf32, #tpu.memory_space<vmem>>, vector<128x8xf32>
    %cst = arith.constant dense<0.000000e+00> : vector<128x96xf32>
    %9 = tpu.matmul %8, %0, %cst {dimension_numbers = #tpu.dot_dimension_numbers<[1], [0], [0], [1], [0, 0, 1, 1], [], []>} : vector<128x8xf32>, vector<8x96xf32>, vector<128x96xf32> -> vector<128x96xf32>
    %10 = vector.broadcast %3 : vector<1x96xf32> to vector<128x96xf32>
    %11 = arith.addf %9, %10 : vector<128x96xf32>
    %c0_9 = arith.constant 0 : index
    %c0_10 = arith.constant 0 : index
    %12 = vector.load %arg4[%c0_9, %c0_10] : memref<128x96xf32, #tpu.memory_space<vmem>>, vector<128x96xf32>
    tpu.vector_store %arg4[%c0_9, %c0_10], %11 {strides = array<i32>} : memref<128x96xf32, #tpu.memory_space<vmem>>, vector<128x96xf32>,
    %cst_11 = arith.constant 0.000000e+00 : f32
    %13 = vector.broadcast %cst_11 : f32 to vector<8x32xf32>
    %c0_12 = arith.constant 0 : index
    %c0_13 = arith.constant 0 : index
    %14 = vector.load %arg4[%c0_12, %c0_13] : memref<128x96xf32, #tpu.memory_space<vmem>>, vector<8x96xf32>
    %cst_14 = arith.constant dense<0.000000e+00> : vector<8x96xf32>
    %15 = tpu.matmul %13, %1, %cst_14 {dimension_numbers = #tpu.dot_dimension_numbers<[1], [0], [0], [1], [0, 0, 1, 1], [], []>} : vector<8x32xf32>, vector<32x96xf32>, vector<8x96xf32> -> vector<8x96xf32>
    %16 = vector.extract_strided_slice %14 {offsets = [0, 0], sizes = [8, 64], strides = [1, 1]} : vector<8x96xf32> to vector<8x64xf32>
    %17 = vector.extract_strided_slice %15 {offsets = [0, 0], sizes = [8, 64], strides = [1, 1]} : vector<8x96xf32> to vector<8x64xf32>
    %18 = arith.addf %16, %17 : vector<8x64xf32>
    %19 = arith.negf %18 : vector<8x64xf32>
    %20 = math.exp %19 : vector<8x64xf32>
    %cst_15 = arith.constant 1.000000e+00 : f32
    %21 = vector.broadcast %cst_15 : f32 to vector<8x64xf32>
    %22 = arith.addf %21, %20 : vector<8x64xf32>
    %23 = arith.divf %21, %22 : vector<8x64xf32>
    %24 = vector.extract_strided_slice %23 {offsets = [0, 0], sizes = [8, 32], strides = [1, 1]} : vector<8x64xf32> to vector<8x32xf32>
    %25 = vector.extract_strided_slice %23 {offsets = [0, 32], sizes = [8, 32], strides = [1, 1]} : vector<8x64xf32> to vector<8x32xf32>
    %26 = vector.extract_strided_slice %14 {offsets = [0, 64], sizes = [8, 32], strides = [1, 1]} : vector<8x96xf32> to vector<8x32xf32>
    %27 = vector.extract_strided_slice %15 {offsets = [0, 64], sizes = [8, 32], strides = [1, 1]} : vector<8x96xf32> to vector<8x32xf32>
    %28 = arith.addf %27, %6 : vector<8x32xf32>
    %29 = arith.mulf %24, %28 : vector<8x32xf32>
    %30 = arith.addf %26, %29 : vector<8x32xf32>
    %31 = math.tanh %30 : vector<8x32xf32>
    %cst_16 = arith.constant 1.000000e+00 : f32
    %32 = vector.broadcast %cst_16 : f32 to vector<8x32xf32>
    %33 = arith.subf %32, %25 : vector<8x32xf32>
    %34 = arith.mulf %33, %31 : vector<8x32xf32>
    %35 = arith.mulf %25, %13 : vector<8x32xf32>
    %36 = arith.addf %34, %35 : vector<8x32xf32>
    %c0_17 = arith.constant 0 : index
    %c0_18 = arith.constant 0 : index
    %37 = vector.load %arg5[%c0_17, %c0_18] : memref<128x32xf32, #tpu.memory_space<vmem>>, vector<8x32xf32>
    tpu.vector_store %arg5[%c0_17, %c0_18], %36 {strides = array<i32>} : memref<128x32xf32, #tpu.memory_space<vmem>>, vector<8x32xf32>,
    %c8_19 = arith.constant 8 : index
    %c0_20 = arith.constant 0 : index
    %38 = vector.load %arg4[%c8_19, %c0_20] : memref<128x96xf32, #tpu.memory_space<vmem>>, vector<8x96xf32>
    %cst_21 = arith.constant dense<0.000000e+00> : vector<8x96xf32>
    %39 = tpu.matmul %36, %1, %cst_21 {dimension_numbers = #tpu.dot_dimension_numbers<[1], [0], [0], [1], [0, 0, 1, 1], [], []>} : vector<8x32xf32>, vector<32x96xf32>, vector<8x96xf32> -> vector<8x96xf32>
    %40 = vector.extract_strided_slice %38 {offsets = [0, 0], sizes = [8, 64], strides = [1, 1]} : vector<8x96xf32> to vector<8x64xf32>
    %41 = vector.extract_strided_slice %39 {offsets = [0, 0], sizes = [8, 64], strides = [1, 1]} : vector<8x96xf32> to vector<8x64xf32>
    %42 = arith.addf %40, %41 : vector<8x64xf32>
    %43 = arith.negf %42 : vector<8x64xf32>
    %44 = math.exp %43 : vector<8x64xf32>
    %cst_22 = arith.constant 1.000000e+00 : f32
    %45 = vector.broadcast %cst_22 : f32 to vector<8x64xf32>
    %46 = arith.addf %45, %44 : vector<8x64xf32>
    %47 = arith.divf %45, %46 : vector<8x64xf32>
    %48 = vector.extract_strided_slice %47 {offsets = [0, 0], sizes = [8, 32], strides = [1, 1]} : vector<8x64xf32> to vector<8x32xf32>
    %49 = vector.extract_strided_slice %47 {offsets = [0, 32], sizes = [8, 32], strides = [1, 1]} : vector<8x64xf32> to vector<8x32xf32>
    %50 = vector.extract_strided_slice %38 {offsets = [0, 64], sizes = [8, 32], strides = [1, 1]} : vector<8x96xf32> to vector<8x32xf32>
    %51 = vector.extract_strided_slice %39 {offsets = [0, 64], sizes = [8, 32], strides = [1, 1]} : vector<8x96xf32> to vector<8x32xf32>
    %52 = arith.addf %51, %6 : vector<8x32xf32>
    %53 = arith.mulf %48, %52 : vector<8x32xf32>
    %54 = arith.addf %50, %53 : vector<8x32xf32>
    %55 = math.tanh %54 : vector<8x32xf32>
    %cst_23 = arith.constant 1.000000e+00 : f32
    %56 = vector.broadcast %cst_23 : f32 to vector<8x32xf32>
    %57 = arith.subf %56, %49 : vector<8x32xf32>
    %58 = arith.mulf %57, %55 : vector<8x32xf32>
    %59 = arith.mulf %49, %36 : vector<8x32xf32>
    %60 = arith.addf %58, %59 : vector<8x32xf32>
    %c8_24 = arith.constant 8 : index
    %c0_25 = arith.constant 0 : index
    %61 = vector.load %arg5[%c8_24, %c0_25] : memref<128x32xf32, #tpu.memory_space<vmem>>, vector<8x32xf32>
    tpu.vector_store %arg5[%c8_24, %c0_25], %60 {strides = array<i32>} : memref<128x32xf32, #tpu.memory_space<vmem>>, vector<8x32xf32>,
    %c16 = arith.constant 16 : index
    %c0_26 = arith.constant 0 : index
    %62 = vector.load %arg4[%c16, %c0_26] : memref<128x96xf32, #tpu.memory_space<vmem>>, vector<8x96xf32>
    %cst_27 = arith.constant dense<0.000000e+00> : vector<8x96xf32>
    %63 = tpu.matmul %60, %1, %cst_27 {dimension_numbers = #tpu.dot_dimension_numbers<[1], [0], [0], [1], [0, 0, 1, 1], [], []>} : vector<8x32xf32>, vector<32x96xf32>, vector<8x96xf32> -> vector<8x96xf32>
    %64 = vector.extract_strided_slice %62 {offsets = [0, 0], sizes = [8, 64], strides = [1, 1]} : vector<8x96xf32> to vector<8x64xf32>
    %65 = vector.extract_strided_slice %63 {offsets = [0, 0], sizes = [8, 64], strides = [1, 1]} : vector<8x96xf32> to vector<8x64xf32>
    %66 = arith.addf %64, %65 : vector<8x64xf32>
    %67 = arith.negf %66 : vector<8x64xf32>
    %68 = math.exp %67 : vector<8x64xf32>
    %cst_28 = arith.constant 1.000000e+00 : f32
    %69 = vector.broadcast %cst_28 : f32 to vector<8x64xf32>
    %70 = arith.addf %69, %68 : vector<8x64xf32>
    %71 = arith.divf %69, %70 : vector<8x64xf32>
    %72 = vector.extract_strided_slice %71 {offsets = [0, 0], sizes = [8, 32], strides = [1, 1]} : vector<8x64xf32> to vector<8x32xf32>
    %73 = vector.extract_strided_slice %71 {offsets = [0, 32], sizes = [8, 32], strides = [1, 1]} : vector<8x64xf32> to vector<8x32xf32>
    %74 = vector.extract_strided_slice %62 {offsets = [0, 64], sizes = [8, 32], strides = [1, 1]} : vector<8x96xf32> to vector<8x32xf32>
    %75 = vector.extract_strided_slice %63 {offsets = [0, 64], sizes = [8, 32], strides = [1, 1]} : vector<8x96xf32> to vector<8x32xf32>
    %76 = arith.addf %75, %6 : vector<8x32xf32>
    %77 = arith.mulf %72, %76 : vector<8x32xf32>
    %78 = arith.addf %74, %77 : vector<8x32xf32>
    %79 = math.tanh %78 : vector<8x32xf32>
    %cst_29 = arith.constant 1.000000e+00 : f32
    %80 = vector.broadcast %cst_29 : f32 to vector<8x32xf32>
    %81 = arith.subf %80, %73 : vector<8x32xf32>
    %82 = arith.mulf %81, %79 : vector<8x32xf32>
    %83 = arith.mulf %73, %60 : vector<8x32xf32>
    %84 = arith.addf %82, %83 : vector<8x32xf32>
    %c16_30 = arith.constant 16 : index
    %c0_31 = arith.constant 0 : index
    %85 = vector.load %arg5[%c16_30, %c0_31] : memref<128x32xf32, #tpu.memory_space<vmem>>, vector<8x32xf32>
    tpu.vector_store %arg5[%c16_30, %c0_31], %84 {strides = array<i32>} : memref<128x32xf32, #tpu.memory_space<vmem>>, vector<8x32xf32>,
    %c24 = arith.constant 24 : index
    %c0_32 = arith.constant 0 : index
    %86 = vector.load %arg4[%c24, %c0_32] : memref<128x96xf32, #tpu.memory_space<vmem>>, vector<8x96xf32>
    %cst_33 = arith.constant dense<0.000000e+00> : vector<8x96xf32>
    %87 = tpu.matmul %84, %1, %cst_33 {dimension_numbers = #tpu.dot_dimension_numbers<[1], [0], [0], [1], [0, 0, 1, 1], [], []>} : vector<8x32xf32>, vector<32x96xf32>, vector<8x96xf32> -> vector<8x96xf32>
    %88 = vector.extract_strided_slice %86 {offsets = [0, 0], sizes = [8, 64], strides = [1, 1]} : vector<8x96xf32> to vector<8x64xf32>
    %89 = vector.extract_strided_slice %87 {offsets = [0, 0], sizes = [8, 64], strides = [1, 1]} : vector<8x96xf32> to vector<8x64xf32>
    %90 = arith.addf %88, %89 : vector<8x64xf32>
    %91 = arith.negf %90 : vector<8x64xf32>
    %92 = math.exp %91 : vector<8x64xf32>
    %cst_34 = arith.constant 1.000000e+00 : f32
    %93 = vector.broadcast %cst_34 : f32 to vector<8x64xf32>
    %94 = arith.addf %93, %92 : vector<8x64xf32>
    %95 = arith.divf %93, %94 : vector<8x64xf32>
    %96 = vector.extract_strided_slice %95 {offsets = [0, 0], sizes = [8, 32], strides = [1, 1]} : vector<8x64xf32> to vector<8x32xf32>
    %97 = vector.extract_strided_slice %95 {offsets = [0, 32], sizes = [8, 32], strides = [1, 1]} : vector<8x64xf32> to vector<8x32xf32>
    %98 = vector.extract_strided_slice %86 {offsets = [0, 64], sizes = [8, 32], strides = [1, 1]} : vector<8x96xf32> to vector<8x32xf32>
    %99 = vector.extract_strided_slice %87 {offsets = [0, 64], sizes = [8, 32], strides = [1, 1]} : vector<8x96xf32> to vector<8x32xf32>
    %100 = arith.addf %99, %6 : vector<8x32xf32>
    %101 = arith.mulf %96, %100 : vector<8x32xf32>
    %102 = arith.addf %98, %101 : vector<8x32xf32>
    %103 = math.tanh %102 : vector<8x32xf32>
    %cst_35 = arith.constant 1.000000e+00 : f32
    %104 = vector.broadcast %cst_35 : f32 to vector<8x32xf32>
    %105 = arith.subf %104, %97 : vector<8x32xf32>
    %106 = arith.mulf %105, %103 : vector<8x32xf32>
    %107 = arith.mulf %97, %84 : vector<8x32xf32>
    %108 = arith.addf %106, %107 : vector<8x32xf32>
    %c24_36 = arith.constant 24 : index
    %c0_37 = arith.constant 0 : index
    %109 = vector.load %arg5[%c24_36, %c0_37] : memref<128x32xf32, #tpu.memory_space<vmem>>, vector<8x32xf32>
    tpu.vector_store %arg5[%c24_36, %c0_37], %108 {strides = array<i32>} : memref<128x32xf32, #tpu.memory_space<vmem>>, vector<8x32xf32>,
    %c32 = arith.constant 32 : index
    %c0_38 = arith.constant 0 : index
    %110 = vector.load %arg4[%c32, %c0_38] : memref<128x96xf32, #tpu.memory_space<vmem>>, vector<8x96xf32>
    %cst_39 = arith.constant dense<0.000000e+00> : vector<8x96xf32>
    %111 = tpu.matmul %108, %1, %cst_39 {dimension_numbers = #tpu.dot_dimension_numbers<[1], [0], [0], [1], [0, 0, 1, 1], [], []>} : vector<8x32xf32>, vector<32x96xf32>, vector<8x96xf32> -> vector<8x96xf32>
    %112 = vector.extract_strided_slice %110 {offsets = [0, 0], sizes = [8, 64], strides = [1, 1]} : vector<8x96xf32> to vector<8x64xf32>
    %113 = vector.extract_strided_slice %111 {offsets = [0, 0], sizes = [8, 64], strides = [1, 1]} : vector<8x96xf32> to vector<8x64xf32>
    %114 = arith.addf %112, %113 : vector<8x64xf32>
    %115 = arith.negf %114 : vector<8x64xf32>
    %116 = math.exp %115 : vector<8x64xf32>
    %cst_40 = arith.constant 1.000000e+00 : f32
    %117 = vector.broadcast %cst_40 : f32 to vector<8x64xf32>
    %118 = arith.addf %117, %116 : vector<8x64xf32>
    %119 = arith.divf %117, %118 : vector<8x64xf32>
    %120 = vector.extract_strided_slice %119 {offsets = [0, 0], sizes = [8, 32], strides = [1, 1]} : vector<8x64xf32> to vector<8x32xf32>
    %121 = vector.extract_strided_slice %119 {offsets = [0, 32], sizes = [8, 32], strides = [1, 1]} : vector<8x64xf32> to vector<8x32xf32>
    %122 = vector.extract_strided_slice %110 {offsets = [0, 64], sizes = [8, 32], strides = [1, 1]} : vector<8x96xf32> to vector<8x32xf32>
    %123 = vector.extract_strided_slice %111 {offsets = [0, 64], sizes = [8, 32], strides = [1, 1]} : vector<8x96xf32> to vector<8x32xf32>
    %124 = arith.addf %123, %6 : vector<8x32xf32>
    %125 = arith.mulf %120, %124 : vector<8x32xf32>
    %126 = arith.addf %122, %125 : vector<8x32xf32>
    %127 = math.tanh %126 : vector<8x32xf32>
    %cst_41 = arith.constant 1.000000e+00 : f32
    %128 = vector.broadcast %cst_41 : f32 to vector<8x32xf32>
    %129 = arith.subf %128, %121 : vector<8x32xf32>
    %130 = arith.mulf %129, %127 : vector<8x32xf32>
    %131 = arith.mulf %121, %108 : vector<8x32xf32>
    %132 = arith.addf %130, %131 : vector<8x32xf32>
    %c32_42 = arith.constant 32 : index
    %c0_43 = arith.constant 0 : index
    %133 = vector.load %arg5[%c32_42, %c0_43] : memref<128x32xf32, #tpu.memory_space<vmem>>, vector<8x32xf32>
    tpu.vector_store %arg5[%c32_42, %c0_43], %132 {strides = array<i32>} : memref<128x32xf32, #tpu.memory_space<vmem>>, vector<8x32xf32>,
    %c40_44 = arith.constant 40 : index
    %c0_45 = arith.constant 0 : index
    %134 = vector.load %arg4[%c40_44, %c0_45] : memref<128x96xf32, #tpu.memory_space<vmem>>, vector<8x96xf32>
    %cst_46 = arith.constant dense<0.000000e+00> : vector<8x96xf32>
    %135 = tpu.matmul %132, %1, %cst_46 {dimension_numbers = #tpu.dot_dimension_numbers<[1], [0], [0], [1], [0, 0, 1, 1], [], []>} : vector<8x32xf32>, vector<32x96xf32>, vector<8x96xf32> -> vector<8x96xf32>
    %136 = vector.extract_strided_slice %134 {offsets = [0, 0], sizes = [8, 64], strides = [1, 1]} : vector<8x96xf32> to vector<8x64xf32>
    %137 = vector.extract_strided_slice %135 {offsets = [0, 0], sizes = [8, 64], strides = [1, 1]} : vector<8x96xf32> to vector<8x64xf32>
    %138 = arith.addf %136, %137 : vector<8x64xf32>
    %139 = arith.negf %138 : vector<8x64xf32>
    %140 = math.exp %139 : vector<8x64xf32>
    %cst_47 = arith.constant 1.000000e+00 : f32
    %141 = vector.broadcast %cst_47 : f32 to vector<8x64xf32>
    %142 = arith.addf %141, %140 : vector<8x64xf32>
    %143 = arith.divf %141, %142 : vector<8x64xf32>
    %144 = vector.extract_strided_slice %143 {offsets = [0, 0], sizes = [8, 32], strides = [1, 1]} : vector<8x64xf32> to vector<8x32xf32>
    %145 = vector.extract_strided_slice %143 {offsets = [0, 32], sizes = [8, 32], strides = [1, 1]} : vector<8x64xf32> to vector<8x32xf32>
    %146 = vector.extract_strided_slice %134 {offsets = [0, 64], sizes = [8, 32], strides = [1, 1]} : vector<8x96xf32> to vector<8x32xf32>
    %147 = vector.extract_strided_slice %135 {offsets = [0, 64], sizes = [8, 32], strides = [1, 1]} : vector<8x96xf32> to vector<8x32xf32>
    %148 = arith.addf %147, %6 : vector<8x32xf32>
    %149 = arith.mulf %144, %148 : vector<8x32xf32>
    %150 = arith.addf %146, %149 : vector<8x32xf32>
    %151 = math.tanh %150 : vector<8x32xf32>
    %cst_48 = arith.constant 1.000000e+00 : f32
    %152 = vector.broadcast %cst_48 : f32 to vector<8x32xf32>
    %153 = arith.subf %152, %145 : vector<8x32xf32>
    %154 = arith.mulf %153, %151 : vector<8x32xf32>
    %155 = arith.mulf %145, %132 : vector<8x32xf32>
    %156 = arith.addf %154, %155 : vector<8x32xf32>
    %c40_49 = arith.constant 40 : index
    %c0_50 = arith.constant 0 : index
    %157 = vector.load %arg5[%c40_49, %c0_50] : memref<128x32xf32, #tpu.memory_space<vmem>>, vector<8x32xf32>
    tpu.vector_store %arg5[%c40_49, %c0_50], %156 {strides = array<i32>} : memref<128x32xf32, #tpu.memory_space<vmem>>, vector<8x32xf32>,
    %c48 = arith.constant 48 : index
    %c0_51 = arith.constant 0 : index
    %158 = vector.load %arg4[%c48, %c0_51] : memref<128x96xf32, #tpu.memory_space<vmem>>, vector<8x96xf32>
    %cst_52 = arith.constant dense<0.000000e+00> : vector<8x96xf32>
    %159 = tpu.matmul %156, %1, %cst_52 {dimension_numbers = #tpu.dot_dimension_numbers<[1], [0], [0], [1], [0, 0, 1, 1], [], []>} : vector<8x32xf32>, vector<32x96xf32>, vector<8x96xf32> -> vector<8x96xf32>
    %160 = vector.extract_strided_slice %158 {offsets = [0, 0], sizes = [8, 64], strides = [1, 1]} : vector<8x96xf32> to vector<8x64xf32>
    %161 = vector.extract_strided_slice %159 {offsets = [0, 0], sizes = [8, 64], strides = [1, 1]} : vector<8x96xf32> to vector<8x64xf32>
    %162 = arith.addf %160, %161 : vector<8x64xf32>
    %163 = arith.negf %162 : vector<8x64xf32>
    %164 = math.exp %163 : vector<8x64xf32>
    %cst_53 = arith.constant 1.000000e+00 : f32
    %165 = vector.broadcast %cst_53 : f32 to vector<8x64xf32>
    %166 = arith.addf %165, %164 : vector<8x64xf32>
    %167 = arith.divf %165, %166 : vector<8x64xf32>
    %168 = vector.extract_strided_slice %167 {offsets = [0, 0], sizes = [8, 32], strides = [1, 1]} : vector<8x64xf32> to vector<8x32xf32>
    %169 = vector.extract_strided_slice %167 {offsets = [0, 32], sizes = [8, 32], strides = [1, 1]} : vector<8x64xf32> to vector<8x32xf32>
    %170 = vector.extract_strided_slice %158 {offsets = [0, 64], sizes = [8, 32], strides = [1, 1]} : vector<8x96xf32> to vector<8x32xf32>
    %171 = vector.extract_strided_slice %159 {offsets = [0, 64], sizes = [8, 32], strides = [1, 1]} : vector<8x96xf32> to vector<8x32xf32>
    %172 = arith.addf %171, %6 : vector<8x32xf32>
    %173 = arith.mulf %168, %172 : vector<8x32xf32>
    %174 = arith.addf %170, %173 : vector<8x32xf32>
    %175 = math.tanh %174 : vector<8x32xf32>
    %cst_54 = arith.constant 1.000000e+00 : f32
    %176 = vector.broadcast %cst_54 : f32 to vector<8x32xf32>
    %177 = arith.subf %176, %169 : vector<8x32xf32>
    %178 = arith.mulf %177, %175 : vector<8x32xf32>
    %179 = arith.mulf %169, %156 : vector<8x32xf32>
    %180 = arith.addf %178, %179 : vector<8x32xf32>
    %c48_55 = arith.constant 48 : index
    %c0_56 = arith.constant 0 : index
    %181 = vector.load %arg5[%c48_55, %c0_56] : memref<128x32xf32, #tpu.memory_space<vmem>>, vector<8x32xf32>
    tpu.vector_store %arg5[%c48_55, %c0_56], %180 {strides = array<i32>} : memref<128x32xf32, #tpu.memory_space<vmem>>, vector<8x32xf32>,
    %c56 = arith.constant 56 : index
    %c0_57 = arith.constant 0 : index
    %182 = vector.load %arg4[%c56, %c0_57] : memref<128x96xf32, #tpu.memory_space<vmem>>, vector<8x96xf32>
    %cst_58 = arith.constant dense<0.000000e+00> : vector<8x96xf32>
    %183 = tpu.matmul %180, %1, %cst_58 {dimension_numbers = #tpu.dot_dimension_numbers<[1], [0], [0], [1], [0, 0, 1, 1], [], []>} : vector<8x32xf32>, vector<32x96xf32>, vector<8x96xf32> -> vector<8x96xf32>
    %184 = vector.extract_strided_slice %182 {offsets = [0, 0], sizes = [8, 64], strides = [1, 1]} : vector<8x96xf32> to vector<8x64xf32>
    %185 = vector.extract_strided_slice %183 {offsets = [0, 0], sizes = [8, 64], strides = [1, 1]} : vector<8x96xf32> to vector<8x64xf32>
    %186 = arith.addf %184, %185 : vector<8x64xf32>
    %187 = arith.negf %186 : vector<8x64xf32>
    %188 = math.exp %187 : vector<8x64xf32>
    %cst_59 = arith.constant 1.000000e+00 : f32
    %189 = vector.broadcast %cst_59 : f32 to vector<8x64xf32>
    %190 = arith.addf %189, %188 : vector<8x64xf32>
    %191 = arith.divf %189, %190 : vector<8x64xf32>
    %192 = vector.extract_strided_slice %191 {offsets = [0, 0], sizes = [8, 32], strides = [1, 1]} : vector<8x64xf32> to vector<8x32xf32>
    %193 = vector.extract_strided_slice %191 {offsets = [0, 32], sizes = [8, 32], strides = [1, 1]} : vector<8x64xf32> to vector<8x32xf32>
    %194 = vector.extract_strided_slice %182 {offsets = [0, 64], sizes = [8, 32], strides = [1, 1]} : vector<8x96xf32> to vector<8x32xf32>
    %195 = vector.extract_strided_slice %183 {offsets = [0, 64], sizes = [8, 32], strides = [1, 1]} : vector<8x96xf32> to vector<8x32xf32>
    %196 = arith.addf %195, %6 : vector<8x32xf32>
    %197 = arith.mulf %192, %196 : vector<8x32xf32>
    %198 = arith.addf %194, %197 : vector<8x32xf32>
    %199 = math.tanh %198 : vector<8x32xf32>
    %cst_60 = arith.constant 1.000000e+00 : f32
    %200 = vector.broadcast %cst_60 : f32 to vector<8x32xf32>
    %201 = arith.subf %200, %193 : vector<8x32xf32>
    %202 = arith.mulf %201, %199 : vector<8x32xf32>
    %203 = arith.mulf %193, %180 : vector<8x32xf32>
    %204 = arith.addf %202, %203 : vector<8x32xf32>
    %c56_61 = arith.constant 56 : index
    %c0_62 = arith.constant 0 : index
    %205 = vector.load %arg5[%c56_61, %c0_62] : memref<128x32xf32, #tpu.memory_space<vmem>>, vector<8x32xf32>
    tpu.vector_store %arg5[%c56_61, %c0_62], %204 {strides = array<i32>} : memref<128x32xf32, #tpu.memory_space<vmem>>, vector<8x32xf32>,
    %c64 = arith.constant 64 : index
    %c0_63 = arith.constant 0 : index
    %206 = vector.load %arg4[%c64, %c0_63] : memref<128x96xf32, #tpu.memory_space<vmem>>, vector<8x96xf32>
    %cst_64 = arith.constant dense<0.000000e+00> : vector<8x96xf32>
    %207 = tpu.matmul %204, %1, %cst_64 {dimension_numbers = #tpu.dot_dimension_numbers<[1], [0], [0], [1], [0, 0, 1, 1], [], []>} : vector<8x32xf32>, vector<32x96xf32>, vector<8x96xf32> -> vector<8x96xf32>
    %208 = vector.extract_strided_slice %206 {offsets = [0, 0], sizes = [8, 64], strides = [1, 1]} : vector<8x96xf32> to vector<8x64xf32>
    %209 = vector.extract_strided_slice %207 {offsets = [0, 0], sizes = [8, 64], strides = [1, 1]} : vector<8x96xf32> to vector<8x64xf32>
    %210 = arith.addf %208, %209 : vector<8x64xf32>
    %211 = arith.negf %210 : vector<8x64xf32>
    %212 = math.exp %211 : vector<8x64xf32>
    %cst_65 = arith.constant 1.000000e+00 : f32
    %213 = vector.broadcast %cst_65 : f32 to vector<8x64xf32>
    %214 = arith.addf %213, %212 : vector<8x64xf32>
    %215 = arith.divf %213, %214 : vector<8x64xf32>
    %216 = vector.extract_strided_slice %215 {offsets = [0, 0], sizes = [8, 32], strides = [1, 1]} : vector<8x64xf32> to vector<8x32xf32>
    %217 = vector.extract_strided_slice %215 {offsets = [0, 32], sizes = [8, 32], strides = [1, 1]} : vector<8x64xf32> to vector<8x32xf32>
    %218 = vector.extract_strided_slice %206 {offsets = [0, 64], sizes = [8, 32], strides = [1, 1]} : vector<8x96xf32> to vector<8x32xf32>
    %219 = vector.extract_strided_slice %207 {offsets = [0, 64], sizes = [8, 32], strides = [1, 1]} : vector<8x96xf32> to vector<8x32xf32>
    %220 = arith.addf %219, %6 : vector<8x32xf32>
    %221 = arith.mulf %216, %220 : vector<8x32xf32>
    %222 = arith.addf %218, %221 : vector<8x32xf32>
    %223 = math.tanh %222 : vector<8x32xf32>
    %cst_66 = arith.constant 1.000000e+00 : f32
    %224 = vector.broadcast %cst_66 : f32 to vector<8x32xf32>
    %225 = arith.subf %224, %217 : vector<8x32xf32>
    %226 = arith.mulf %225, %223 : vector<8x32xf32>
    %227 = arith.mulf %217, %204 : vector<8x32xf32>
    %228 = arith.addf %226, %227 : vector<8x32xf32>
    %c64_67 = arith.constant 64 : index
    %c0_68 = arith.constant 0 : index
    %229 = vector.load %arg5[%c64_67, %c0_68] : memref<128x32xf32, #tpu.memory_space<vmem>>, vector<8x32xf32>
    tpu.vector_store %arg5[%c64_67, %c0_68], %228 {strides = array<i32>} : memref<128x32xf32, #tpu.memory_space<vmem>>, vector<8x32xf32>,
    %c72 = arith.constant 72 : index
    %c0_69 = arith.constant 0 : index
    %230 = vector.load %arg4[%c72, %c0_69] : memref<128x96xf32, #tpu.memory_space<vmem>>, vector<8x96xf32>
    %cst_70 = arith.constant dense<0.000000e+00> : vector<8x96xf32>
    %231 = tpu.matmul %228, %1, %cst_70 {dimension_numbers = #tpu.dot_dimension_numbers<[1], [0], [0], [1], [0, 0, 1, 1], [], []>} : vector<8x32xf32>, vector<32x96xf32>, vector<8x96xf32> -> vector<8x96xf32>
    %232 = vector.extract_strided_slice %230 {offsets = [0, 0], sizes = [8, 64], strides = [1, 1]} : vector<8x96xf32> to vector<8x64xf32>
    %233 = vector.extract_strided_slice %231 {offsets = [0, 0], sizes = [8, 64], strides = [1, 1]} : vector<8x96xf32> to vector<8x64xf32>
    %234 = arith.addf %232, %233 : vector<8x64xf32>
    %235 = arith.negf %234 : vector<8x64xf32>
    %236 = math.exp %235 : vector<8x64xf32>
    %cst_71 = arith.constant 1.000000e+00 : f32
    %237 = vector.broadcast %cst_71 : f32 to vector<8x64xf32>
    %238 = arith.addf %237, %236 : vector<8x64xf32>
    %239 = arith.divf %237, %238 : vector<8x64xf32>
    %240 = vector.extract_strided_slice %239 {offsets = [0, 0], sizes = [8, 32], strides = [1, 1]} : vector<8x64xf32> to vector<8x32xf32>
    %241 = vector.extract_strided_slice %239 {offsets = [0, 32], sizes = [8, 32], strides = [1, 1]} : vector<8x64xf32> to vector<8x32xf32>
    %242 = vector.extract_strided_slice %230 {offsets = [0, 64], sizes = [8, 32], strides = [1, 1]} : vector<8x96xf32> to vector<8x32xf32>
    %243 = vector.extract_strided_slice %231 {offsets = [0, 64], sizes = [8, 32], strides = [1, 1]} : vector<8x96xf32> to vector<8x32xf32>
    %244 = arith.addf %243, %6 : vector<8x32xf32>
    %245 = arith.mulf %240, %244 : vector<8x32xf32>
    %246 = arith.addf %242, %245 : vector<8x32xf32>
    %247 = math.tanh %246 : vector<8x32xf32>
    %cst_72 = arith.constant 1.000000e+00 : f32
    %248 = vector.broadcast %cst_72 : f32 to vector<8x32xf32>
    %249 = arith.subf %248, %241 : vector<8x32xf32>
    %250 = arith.mulf %249, %247 : vector<8x32xf32>
    %251 = arith.mulf %241, %228 : vector<8x32xf32>
    %252 = arith.addf %250, %251 : vector<8x32xf32>
    %c72_73 = arith.constant 72 : index
    %c0_74 = arith.constant 0 : index
    %253 = vector.load %arg5[%c72_73, %c0_74] : memref<128x32xf32, #tpu.memory_space<vmem>>, vector<8x32xf32>
    tpu.vector_store %arg5[%c72_73, %c0_74], %252 {strides = array<i32>} : memref<128x32xf32, #tpu.memory_space<vmem>>, vector<8x32xf32>,
    %c80 = arith.constant 80 : index
    %c0_75 = arith.constant 0 : index
    %254 = vector.load %arg4[%c80, %c0_75] : memref<128x96xf32, #tpu.memory_space<vmem>>, vector<8x96xf32>
    %cst_76 = arith.constant dense<0.000000e+00> : vector<8x96xf32>
    %255 = tpu.matmul %252, %1, %cst_76 {dimension_numbers = #tpu.dot_dimension_numbers<[1], [0], [0], [1], [0, 0, 1, 1], [], []>} : vector<8x32xf32>, vector<32x96xf32>, vector<8x96xf32> -> vector<8x96xf32>
    %256 = vector.extract_strided_slice %254 {offsets = [0, 0], sizes = [8, 64], strides = [1, 1]} : vector<8x96xf32> to vector<8x64xf32>
    %257 = vector.extract_strided_slice %255 {offsets = [0, 0], sizes = [8, 64], strides = [1, 1]} : vector<8x96xf32> to vector<8x64xf32>
    %258 = arith.addf %256, %257 : vector<8x64xf32>
    %259 = arith.negf %258 : vector<8x64xf32>
    %260 = math.exp %259 : vector<8x64xf32>
    %cst_77 = arith.constant 1.000000e+00 : f32
    %261 = vector.broadcast %cst_77 : f32 to vector<8x64xf32>
    %262 = arith.addf %261, %260 : vector<8x64xf32>
    %263 = arith.divf %261, %262 : vector<8x64xf32>
    %264 = vector.extract_strided_slice %263 {offsets = [0, 0], sizes = [8, 32], strides = [1, 1]} : vector<8x64xf32> to vector<8x32xf32>
    %265 = vector.extract_strided_slice %263 {offsets = [0, 32], sizes = [8, 32], strides = [1, 1]} : vector<8x64xf32> to vector<8x32xf32>
    %266 = vector.extract_strided_slice %254 {offsets = [0, 64], sizes = [8, 32], strides = [1, 1]} : vector<8x96xf32> to vector<8x32xf32>
    %267 = vector.extract_strided_slice %255 {offsets = [0, 64], sizes = [8, 32], strides = [1, 1]} : vector<8x96xf32> to vector<8x32xf32>
    %268 = arith.addf %267, %6 : vector<8x32xf32>
    %269 = arith.mulf %264, %268 : vector<8x32xf32>
    %270 = arith.addf %266, %269 : vector<8x32xf32>
    %271 = math.tanh %270 : vector<8x32xf32>
    %cst_78 = arith.constant 1.000000e+00 : f32
    %272 = vector.broadcast %cst_78 : f32 to vector<8x32xf32>
    %273 = arith.subf %272, %265 : vector<8x32xf32>
    %274 = arith.mulf %273, %271 : vector<8x32xf32>
    %275 = arith.mulf %265, %252 : vector<8x32xf32>
    %276 = arith.addf %274, %275 : vector<8x32xf32>
    %c80_79 = arith.constant 80 : index
    %c0_80 = arith.constant 0 : index
    %277 = vector.load %arg5[%c80_79, %c0_80] : memref<128x32xf32, #tpu.memory_space<vmem>>, vector<8x32xf32>
    tpu.vector_store %arg5[%c80_79, %c0_80], %276 {strides = array<i32>} : memref<128x32xf32, #tpu.memory_space<vmem>>, vector<8x32xf32>,
    %c88 = arith.constant 88 : index
    %c0_81 = arith.constant 0 : index
    %278 = vector.load %arg4[%c88, %c0_81] : memref<128x96xf32, #tpu.memory_space<vmem>>, vector<8x96xf32>
    %cst_82 = arith.constant dense<0.000000e+00> : vector<8x96xf32>
    %279 = tpu.matmul %276, %1, %cst_82 {dimension_numbers = #tpu.dot_dimension_numbers<[1], [0], [0], [1], [0, 0, 1, 1], [], []>} : vector<8x32xf32>, vector<32x96xf32>, vector<8x96xf32> -> vector<8x96xf32>
    %280 = vector.extract_strided_slice %278 {offsets = [0, 0], sizes = [8, 64], strides = [1, 1]} : vector<8x96xf32> to vector<8x64xf32>
    %281 = vector.extract_strided_slice %279 {offsets = [0, 0], sizes = [8, 64], strides = [1, 1]} : vector<8x96xf32> to vector<8x64xf32>
    %282 = arith.addf %280, %281 : vector<8x64xf32>
    %283 = arith.negf %282 : vector<8x64xf32>
    %284 = math.exp %283 : vector<8x64xf32>
    %cst_83 = arith.constant 1.000000e+00 : f32
    %285 = vector.broadcast %cst_83 : f32 to vector<8x64xf32>
    %286 = arith.addf %285, %284 : vector<8x64xf32>
    %287 = arith.divf %285, %286 : vector<8x64xf32>
    %288 = vector.extract_strided_slice %287 {offsets = [0, 0], sizes = [8, 32], strides = [1, 1]} : vector<8x64xf32> to vector<8x32xf32>
    %289 = vector.extract_strided_slice %287 {offsets = [0, 32], sizes = [8, 32], strides = [1, 1]} : vector<8x64xf32> to vector<8x32xf32>
    %290 = vector.extract_strided_slice %278 {offsets = [0, 64], sizes = [8, 32], strides = [1, 1]} : vector<8x96xf32> to vector<8x32xf32>
    %291 = vector.extract_strided_slice %279 {offsets = [0, 64], sizes = [8, 32], strides = [1, 1]} : vector<8x96xf32> to vector<8x32xf32>
    %292 = arith.addf %291, %6 : vector<8x32xf32>
    %293 = arith.mulf %288, %292 : vector<8x32xf32>
    %294 = arith.addf %290, %293 : vector<8x32xf32>
    %295 = math.tanh %294 : vector<8x32xf32>
    %cst_84 = arith.constant 1.000000e+00 : f32
    %296 = vector.broadcast %cst_84 : f32 to vector<8x32xf32>
    %297 = arith.subf %296, %289 : vector<8x32xf32>
    %298 = arith.mulf %297, %295 : vector<8x32xf32>
    %299 = arith.mulf %289, %276 : vector<8x32xf32>
    %300 = arith.addf %298, %299 : vector<8x32xf32>
    %c88_85 = arith.constant 88 : index
    %c0_86 = arith.constant 0 : index
    %301 = vector.load %arg5[%c88_85, %c0_86] : memref<128x32xf32, #tpu.memory_space<vmem>>, vector<8x32xf32>
    tpu.vector_store %arg5[%c88_85, %c0_86], %300 {strides = array<i32>} : memref<128x32xf32, #tpu.memory_space<vmem>>, vector<8x32xf32>,
    %c96 = arith.constant 96 : index
    %c0_87 = arith.constant 0 : index
    %302 = vector.load %arg4[%c96, %c0_87] : memref<128x96xf32, #tpu.memory_space<vmem>>, vector<8x96xf32>
    %cst_88 = arith.constant dense<0.000000e+00> : vector<8x96xf32>
    %303 = tpu.matmul %300, %1, %cst_88 {dimension_numbers = #tpu.dot_dimension_numbers<[1], [0], [0], [1], [0, 0, 1, 1], [], []>} : vector<8x32xf32>, vector<32x96xf32>, vector<8x96xf32> -> vector<8x96xf32>
    %304 = vector.extract_strided_slice %302 {offsets = [0, 0], sizes = [8, 64], strides = [1, 1]} : vector<8x96xf32> to vector<8x64xf32>
    %305 = vector.extract_strided_slice %303 {offsets = [0, 0], sizes = [8, 64], strides = [1, 1]} : vector<8x96xf32> to vector<8x64xf32>
    %306 = arith.addf %304, %305 : vector<8x64xf32>
    %307 = arith.negf %306 : vector<8x64xf32>
    %308 = math.exp %307 : vector<8x64xf32>
    %cst_89 = arith.constant 1.000000e+00 : f32
    %309 = vector.broadcast %cst_89 : f32 to vector<8x64xf32>
    %310 = arith.addf %309, %308 : vector<8x64xf32>
    %311 = arith.divf %309, %310 : vector<8x64xf32>
    %312 = vector.extract_strided_slice %311 {offsets = [0, 0], sizes = [8, 32], strides = [1, 1]} : vector<8x64xf32> to vector<8x32xf32>
    %313 = vector.extract_strided_slice %311 {offsets = [0, 32], sizes = [8, 32], strides = [1, 1]} : vector<8x64xf32> to vector<8x32xf32>
    %314 = vector.extract_strided_slice %302 {offsets = [0, 64], sizes = [8, 32], strides = [1, 1]} : vector<8x96xf32> to vector<8x32xf32>
    %315 = vector.extract_strided_slice %303 {offsets = [0, 64], sizes = [8, 32], strides = [1, 1]} : vector<8x96xf32> to vector<8x32xf32>
    %316 = arith.addf %315, %6 : vector<8x32xf32>
    %317 = arith.mulf %312, %316 : vector<8x32xf32>
    %318 = arith.addf %314, %317 : vector<8x32xf32>
    %319 = math.tanh %318 : vector<8x32xf32>
    %cst_90 = arith.constant 1.000000e+00 : f32
    %320 = vector.broadcast %cst_90 : f32 to vector<8x32xf32>
    %321 = arith.subf %320, %313 : vector<8x32xf32>
    %322 = arith.mulf %321, %319 : vector<8x32xf32>
    %323 = arith.mulf %313, %300 : vector<8x32xf32>
    %324 = arith.addf %322, %323 : vector<8x32xf32>
    %c96_91 = arith.constant 96 : index
    %c0_92 = arith.constant 0 : index
    %325 = vector.load %arg5[%c96_91, %c0_92] : memref<128x32xf32, #tpu.memory_space<vmem>>, vector<8x32xf32>
    tpu.vector_store %arg5[%c96_91, %c0_92], %324 {strides = array<i32>} : memref<128x32xf32, #tpu.memory_space<vmem>>, vector<8x32xf32>,
    %c104 = arith.constant 104 : index
    %c0_93 = arith.constant 0 : index
    %326 = vector.load %arg4[%c104, %c0_93] : memref<128x96xf32, #tpu.memory_space<vmem>>, vector<8x96xf32>
    %cst_94 = arith.constant dense<0.000000e+00> : vector<8x96xf32>
    %327 = tpu.matmul %324, %1, %cst_94 {dimension_numbers = #tpu.dot_dimension_numbers<[1], [0], [0], [1], [0, 0, 1, 1], [], []>} : vector<8x32xf32>, vector<32x96xf32>, vector<8x96xf32> -> vector<8x96xf32>
    %328 = vector.extract_strided_slice %326 {offsets = [0, 0], sizes = [8, 64], strides = [1, 1]} : vector<8x96xf32> to vector<8x64xf32>
    %329 = vector.extract_strided_slice %327 {offsets = [0, 0], sizes = [8, 64], strides = [1, 1]} : vector<8x96xf32> to vector<8x64xf32>
    %330 = arith.addf %328, %329 : vector<8x64xf32>
    %331 = arith.negf %330 : vector<8x64xf32>
    %332 = math.exp %331 : vector<8x64xf32>
    %cst_95 = arith.constant 1.000000e+00 : f32
    %333 = vector.broadcast %cst_95 : f32 to vector<8x64xf32>
    %334 = arith.addf %333, %332 : vector<8x64xf32>
    %335 = arith.divf %333, %334 : vector<8x64xf32>
    %336 = vector.extract_strided_slice %335 {offsets = [0, 0], sizes = [8, 32], strides = [1, 1]} : vector<8x64xf32> to vector<8x32xf32>
    %337 = vector.extract_strided_slice %335 {offsets = [0, 32], sizes = [8, 32], strides = [1, 1]} : vector<8x64xf32> to vector<8x32xf32>
    %338 = vector.extract_strided_slice %326 {offsets = [0, 64], sizes = [8, 32], strides = [1, 1]} : vector<8x96xf32> to vector<8x32xf32>
    %339 = vector.extract_strided_slice %327 {offsets = [0, 64], sizes = [8, 32], strides = [1, 1]} : vector<8x96xf32> to vector<8x32xf32>
    %340 = arith.addf %339, %6 : vector<8x32xf32>
    %341 = arith.mulf %336, %340 : vector<8x32xf32>
    %342 = arith.addf %338, %341 : vector<8x32xf32>
    %343 = math.tanh %342 : vector<8x32xf32>
    %cst_96 = arith.constant 1.000000e+00 : f32
    %344 = vector.broadcast %cst_96 : f32 to vector<8x32xf32>
    %345 = arith.subf %344, %337 : vector<8x32xf32>
    %346 = arith.mulf %345, %343 : vector<8x32xf32>
    %347 = arith.mulf %337, %324 : vector<8x32xf32>
    %348 = arith.addf %346, %347 : vector<8x32xf32>
    %c104_97 = arith.constant 104 : index
    %c0_98 = arith.constant 0 : index
    %349 = vector.load %arg5[%c104_97, %c0_98] : memref<128x32xf32, #tpu.memory_space<vmem>>, vector<8x32xf32>
    tpu.vector_store %arg5[%c104_97, %c0_98], %348 {strides = array<i32>} : memref<128x32xf32, #tpu.memory_space<vmem>>, vector<8x32xf32>,
    %c112 = arith.constant 112 : index
    %c0_99 = arith.constant 0 : index
    %350 = vector.load %arg4[%c112, %c0_99] : memref<128x96xf32, #tpu.memory_space<vmem>>, vector<8x96xf32>
    %cst_100 = arith.constant dense<0.000000e+00> : vector<8x96xf32>
    %351 = tpu.matmul %348, %1, %cst_100 {dimension_numbers = #tpu.dot_dimension_numbers<[1], [0], [0], [1], [0, 0, 1, 1], [], []>} : vector<8x32xf32>, vector<32x96xf32>, vector<8x96xf32> -> vector<8x96xf32>
    %352 = vector.extract_strided_slice %350 {offsets = [0, 0], sizes = [8, 64], strides = [1, 1]} : vector<8x96xf32> to vector<8x64xf32>
    %353 = vector.extract_strided_slice %351 {offsets = [0, 0], sizes = [8, 64], strides = [1, 1]} : vector<8x96xf32> to vector<8x64xf32>
    %354 = arith.addf %352, %353 : vector<8x64xf32>
    %355 = arith.negf %354 : vector<8x64xf32>
    %356 = math.exp %355 : vector<8x64xf32>
    %cst_101 = arith.constant 1.000000e+00 : f32
    %357 = vector.broadcast %cst_101 : f32 to vector<8x64xf32>
    %358 = arith.addf %357, %356 : vector<8x64xf32>
    %359 = arith.divf %357, %358 : vector<8x64xf32>
    %360 = vector.extract_strided_slice %359 {offsets = [0, 0], sizes = [8, 32], strides = [1, 1]} : vector<8x64xf32> to vector<8x32xf32>
    %361 = vector.extract_strided_slice %359 {offsets = [0, 32], sizes = [8, 32], strides = [1, 1]} : vector<8x64xf32> to vector<8x32xf32>
    %362 = vector.extract_strided_slice %350 {offsets = [0, 64], sizes = [8, 32], strides = [1, 1]} : vector<8x96xf32> to vector<8x32xf32>
    %363 = vector.extract_strided_slice %351 {offsets = [0, 64], sizes = [8, 32], strides = [1, 1]} : vector<8x96xf32> to vector<8x32xf32>
    %364 = arith.addf %363, %6 : vector<8x32xf32>
    %365 = arith.mulf %360, %364 : vector<8x32xf32>
    %366 = arith.addf %362, %365 : vector<8x32xf32>
    %367 = math.tanh %366 : vector<8x32xf32>
    %cst_102 = arith.constant 1.000000e+00 : f32
    %368 = vector.broadcast %cst_102 : f32 to vector<8x32xf32>
    %369 = arith.subf %368, %361 : vector<8x32xf32>
    %370 = arith.mulf %369, %367 : vector<8x32xf32>
    %371 = arith.mulf %361, %348 : vector<8x32xf32>
    %372 = arith.addf %370, %371 : vector<8x32xf32>
    %c112_103 = arith.constant 112 : index
    %c0_104 = arith.constant 0 : index
    %373 = vector.load %arg5[%c112_103, %c0_104] : memref<128x32xf32, #tpu.memory_space<vmem>>, vector<8x32xf32>
    tpu.vector_store %arg5[%c112_103, %c0_104], %372 {strides = array<i32>} : memref<128x32xf32, #tpu.memory_space<vmem>>, vector<8x32xf32>,
    %c120 = arith.constant 120 : index
    %c0_105 = arith.constant 0 : index
    %374 = vector.load %arg4[%c120, %c0_105] : memref<128x96xf32, #tpu.memory_space<vmem>>, vector<8x96xf32>
    %cst_106 = arith.constant dense<0.000000e+00> : vector<8x96xf32>
    %375 = tpu.matmul %372, %1, %cst_106 {dimension_numbers = #tpu.dot_dimension_numbers<[1], [0], [0], [1], [0, 0, 1, 1], [], []>} : vector<8x32xf32>, vector<32x96xf32>, vector<8x96xf32> -> vector<8x96xf32>
    %376 = vector.extract_strided_slice %374 {offsets = [0, 0], sizes = [8, 64], strides = [1, 1]} : vector<8x96xf32> to vector<8x64xf32>
    %377 = vector.extract_strided_slice %375 {offsets = [0, 0], sizes = [8, 64], strides = [1, 1]} : vector<8x96xf32> to vector<8x64xf32>
    %378 = arith.addf %376, %377 : vector<8x64xf32>
    %379 = arith.negf %378 : vector<8x64xf32>
    %380 = math.exp %379 : vector<8x64xf32>
    %cst_107 = arith.constant 1.000000e+00 : f32
    %381 = vector.broadcast %cst_107 : f32 to vector<8x64xf32>
    %382 = arith.addf %381, %380 : vector<8x64xf32>
    %383 = arith.divf %381, %382 : vector<8x64xf32>
    %384 = vector.extract_strided_slice %383 {offsets = [0, 0], sizes = [8, 32], strides = [1, 1]} : vector<8x64xf32> to vector<8x32xf32>
    %385 = vector.extract_strided_slice %383 {offsets = [0, 32], sizes = [8, 32], strides = [1, 1]} : vector<8x64xf32> to vector<8x32xf32>
    %386 = vector.extract_strided_slice %374 {offsets = [0, 64], sizes = [8, 32], strides = [1, 1]} : vector<8x96xf32> to vector<8x32xf32>
    %387 = vector.extract_strided_slice %375 {offsets = [0, 64], sizes = [8, 32], strides = [1, 1]} : vector<8x96xf32> to vector<8x32xf32>
    %388 = arith.addf %387, %6 : vector<8x32xf32>
    %389 = arith.mulf %384, %388 : vector<8x32xf32>
    %390 = arith.addf %386, %389 : vector<8x32xf32>
    %391 = math.tanh %390 : vector<8x32xf32>
    %cst_108 = arith.constant 1.000000e+00 : f32
    %392 = vector.broadcast %cst_108 : f32 to vector<8x32xf32>
    %393 = arith.subf %392, %385 : vector<8x32xf32>
    %394 = arith.mulf %393, %391 : vector<8x32xf32>
    %395 = arith.mulf %385, %372 : vector<8x32xf32>
    %396 = arith.addf %394, %395 : vector<8x32xf32>
    %c120_109 = arith.constant 120 : index
    %c0_110 = arith.constant 0 : index
    %397 = vector.load %arg5[%c120_109, %c0_110] : memref<128x32xf32, #tpu.memory_space<vmem>>, vector<8x32xf32>
    tpu.vector_store %arg5[%c120_109, %c0_110], %396 {strides = array<i32>} : memref<128x32xf32, #tpu.memory_space<vmem>>, vector<8x32xf32>,
    %c0_111 = arith.constant 0 : index
    %c0_112 = arith.constant 0 : index
    %398 = vector.load %arg5[%c0_111, %c0_112] : memref<128x32xf32, #tpu.memory_space<vmem>>, vector<128x32xf32>
    %cst_113 = arith.constant dense<0.000000e+00> : vector<128x8xf32>
    %399 = tpu.matmul %398, %2, %cst_113 {dimension_numbers = #tpu.dot_dimension_numbers<[1], [0], [0], [1], [0, 0, 1, 1], [], []>} : vector<128x32xf32>, vector<32x8xf32>, vector<128x8xf32> -> vector<128x8xf32>
    %400 = vector.broadcast %7 : vector<1x8xf32> to vector<128x8xf32>
    %401 = arith.addf %399, %400 : vector<128x8xf32>
    %c0_114 = arith.constant 0 : index
    %c0_115 = arith.constant 0 : index
    %402 = vector.load %arg3[%c0_114, %c0_115] : memref<128x8xf32, #tpu.memory_space<vmem>>, vector<128x8xf32>
    tpu.vector_store %arg3[%c0_114, %c0_115], %401 {strides = array<i32>} : memref<128x8xf32, #tpu.memory_space<vmem>>, vector<128x8xf32>,
    return
  }
}

</mosaic_0001>

<llo_original>
// kernel: gru_fc_pallas.1
$region0: #{gru_fc_pallas.1}
  #allocation0 [shape = 'u32[]', space=smem, size = 0x4, offset = 0x4, fixed_abs, tag = 'smem constant byte address 0x4 - core index']
  #allocation1 [shape = 'u32[144,128]{1,0:T(1,128)}', space=vmem, size = 0x12000, scoped, tag = 'internal scratch']
  #allocation2 [shape = 'f32[128,96]{1,0:T(8,128)}', space=vmem, size = 0x10000, scoped, tag = 'scratch operand']
  #allocation3 [shape = 'f32[128,32]{1,0:T(8,128)}', space=vmem, size = 0x10000, scoped, tag = 'scratch operand']
  %s0 = inlined_call_operand.vmem [shape: f32[128,8], index: 0, kind: input, shape index: {}]
  %s1 = inlined_call_operand.vmem [shape: f32[72,96], index: 1, kind: input, shape index: {}]
  %s2 = inlined_call_operand.vmem [shape: f32[3,96], index: 2, kind: input, shape index: {}]
  %s3 = inlined_call_operand.vmem [shape: f32[128,8], index: 3, kind: output, shape index: {}]
  %s4 = sld [smem:[#allocation0]]
  $region22: #{gru_fc_pallas.1} parent=0
    _
  %s6 = ssub.s32 1, %s4
  %s7 = scalar_select 0, %s6, %s4
  // Predicated region
  $region2: #{gru_fc_pallas.1} parent=0 // pred_check
    _
  $region3: #{gru_fc_pallas.1} parent=0 // pred_check_branch
    %9 = sbr.rel (0) target = $region5
  $region4: #{gru_fc_pallas.1} parent=0 // pred_region
    _
  $region5: #{gru_fc_pallas.1} parent=0 // pred_fallthru
    _
  // Predicated region
  $region6: #{gru_fc_pallas.1} parent=0 // pred_check
    _
  $region7: #{gru_fc_pallas.1} parent=0 // pred_check_branch
    %11 = sbr.rel (0) target = $region9
  $region8: #{gru_fc_pallas.1} parent=0 // pred_region
    _
  $region9: #{gru_fc_pallas.1} parent=0 // pred_fallthru
    _
  // Predicated region
  $region10: #{gru_fc_pallas.1} parent=0 // pred_check
    _
  $region11: #{gru_fc_pallas.1} parent=0 // pred_check_branch
    %13 = sbr.rel (0) target = $region13
  $region12: #{gru_fc_pallas.1} parent=0 // pred_region
    _
  $region13: #{gru_fc_pallas.1} parent=0 // pred_fallthru
    _
  %v14 = vld [vmem:[%s1] sm:$0xff]
  %v15 = vld [vmem:[%s1 + $0x8] sm:$0xff]
  %v16 = vld [vmem:[%s1 + $0x10] sm:$0xff]
  %v17 = vld [vmem:[%s1 + $0x18] sm:$0xff]
  %v18 = vld [vmem:[%s1 + $0x20] sm:$0xff]
  %v19 = vld [vmem:[%s1 + $0x28] sm:$0xff]
  %v20 = vld [vmem:[%s1 + $0x30] sm:$0xff]
  %v21 = vld [vmem:[%s1 + $0x38] sm:$0xff]
  %v22 = vld [vmem:[%s1 + $0x40] sm:$0xff]
  %v23 = vld [vmem:[%s2] sm:$0x1]
  %v24 = vld [vmem:[%s2 + $0x1] sm:$0x1]
  %v25 = vlaneseq
  %v26 = vshrl.u32 %v25, 7
  %v27 = vsub.s32 0, %v26
  %v28 = vrot.slane %v24, %v27
  %v29 = vld [vmem:[%s2 + $0x2] sm:$0x1]
  %v30 = vld [vmem:[%s0] sm:$0xff]
  %v31 = vld [vmem:[%s0 + $0x8] sm:$0xff]
  %v32 = vld [vmem:[%s0 + $0x10] sm:$0xff]
  %v33 = vld [vmem:[%s0 + $0x18] sm:$0xff]
  %v34 = vld [vmem:[%s0 + $0x20] sm:$0xff]
  %v35 = vld [vmem:[%s0 + $0x28] sm:$0xff]
  %v36 = vld [vmem:[%s0 + $0x30] sm:$0xff]
  %v37 = vld [vmem:[%s0 + $0x38] sm:$0xff]
  %v38 = vld [vmem:[%s0 + $0x40] sm:$0xff]
  %v39 = vld [vmem:[%s0 + $0x48] sm:$0xff]
  %v40 = vld [vmem:[%s0 + $0x50] sm:$0xff]
  %v41 = vld [vmem:[%s0 + $0x58] sm:$0xff]
  %v42 = vld [vmem:[%s0 + $0x60] sm:$0xff]
  %v43 = vld [vmem:[%s0 + $0x68] sm:$0xff]
  %v44 = vld [vmem:[%s0 + $0x70] sm:$0xff]
  %v45 = vld [vmem:[%s0 + $0x78] sm:$0xff]
  %v46 = vlaneseq
  %v47 = vshrl.u32 %v46, 7
  %v48 = vsub.s32 0, %v47
  %v49 = vrot.slane %v23, %v48
  %vm50 = vcmask 64512
  %v52 = vsel %vm50, %v30, 0
  %v55 = vsel %vm50, %v31, 0
  %v58 = vsel %vm50, %v32, 0
  %v61 = vsel %vm50, %v33, 0
  %v64 = vsel %vm50, %v34, 0
  %v67 = vsel %vm50, %v35, 0
  %v70 = vsel %vm50, %v36, 0
  %v73 = vsel %vm50, %v37, 0
  %v76 = vsel %vm50, %v38, 0
  %v79 = vsel %vm50, %v39, 0
  %v82 = vsel %vm50, %v40, 0
  %v85 = vsel %vm50, %v41, 0
  %v88 = vsel %vm50, %v42, 0
  %v91 = vsel %vm50, %v43, 0
  %v94 = vsel %vm50, %v44, 0
  %v97 = vsel %vm50, %v45, 0
  %99 = vmatprep.subr.mxu0 0.0
  %100 = vmatpush1.msra.mxu0 %v14
  %101 = vmatprep.subr.mxu0 0.0
  %102 = vmatpush1.msra.mxu0 0.0
  %103 = vmatprep.subr.mxu0 0.0
  %104 = vmatpush1.msra.mxu0 0.0
  %105 = vmatprep.subr.mxu0 0.0
  %106 = vmatpush1.msra.mxu0 0.0
  %107 = vmatprep.subr.mxu0 0.0
  %108 = vmatpush1.msra.mxu0 0.0
  %109 = vmatprep.subr.mxu0 0.0
  %110 = vmatpush1.msra.mxu0 0.0
  %111 = vmatprep.subr.mxu0 0.0
  %112 = vmatpush1.msra.mxu0 0.0
  %113 = vmatprep.subr.mxu0 0.0
  %114 = vmatpush1.msra.mxu0 0.0
  %115 = vmatprep.subr.mxu0 0.0
  %116 = vmatpush1.msra.mxu0 0.0
  %117 = vmatprep.subr.mxu0 0.0
  %118 = vmatpush1.msra.mxu0 0.0
  %119 = vmatprep.subr.mxu0 0.0
  %120 = vmatpush1.msra.mxu0 0.0
  %121 = vmatprep.subr.mxu0 0.0
  %122 = vmatpush1.msra.mxu0 0.0
  %123 = vmatprep.subr.mxu0 0.0
  %124 = vmatpush1.msra.mxu0 0.0
  %125 = vmatprep.subr.mxu0 0.0
  %126 = vmatpush1.msra.mxu0 0.0
  %127 = vmatprep.subr.mxu0 0.0
  %128 = vmatpush1.msra.mxu0 0.0
  %129 = vmatprep.subr.mxu0 0.0
  %130 = vmatpush1.msra.mxu0 0.0
  %131 = vmatprep.subr.mxu0 0.0
  %132 = vmatpush1.msra.mxu0 0.0
  %133 = vmatprep.subr.mxu0 0.0
  %134 = vmatpush1.msra.mxu0 0.0
  %135 = vmatprep.subr.mxu0 0.0
  %136 = vmatpush1.msra.mxu0 0.0
  %137 = vmatprep.subr.mxu0 0.0
  %138 = vmatpush1.msra.mxu0 0.0
  %139 = vmatprep.subr.mxu0 0.0
  %140 = vmatpush1.msra.mxu0 0.0
  %141 = vmatprep.subr.mxu0 0.0
  %142 = vmatpush1.msra.mxu0 0.0
  %143 = vmatprep.subr.mxu0 0.0
  %144 = vmatpush1.msra.mxu0 0.0
  %145 = vmatprep.subr.mxu0 0.0
  %146 = vmatpush1.msra.mxu0 0.0
  %147 = vmatprep.subr.mxu0 0.0
  %148 = vmatpush1.msra.mxu0 0.0
  %149 = vmatprep.subr.mxu0 0.0
  %150 = vmatpush1.msra.mxu0 0.0
  %151 = vmatprep.subr.mxu0 0.0
  %152 = vmatpush1.msra.mxu0 0.0
  %153 = vmatprep.subr.mxu0 0.0
  %154 = vmatpush1.msra.mxu0 0.0
  %155 = vmatprep.subr.mxu0 0.0
  %156 = vmatpush1.msra.mxu0 0.0
  %157 = vmatprep.subr.mxu0 0.0
  %158 = vmatpush1.msra.mxu0 0.0
  %159 = vmatprep.subr.mxu0 0.0
  %160 = vmatpush1.msra.mxu0 0.0
  %161 = vmatprep.subr.mxu0 0.0
  %162 = vmatpush1.msra.mxu0 0.0
  %163 = vmatprep.mubr.f32.mxu0 0.0
  %164 = vmatmul.mubr.f32.gmra.mrb[0].mxu0 %v52
  %v165 = vpop.f32.mrb[0].mxu0
  %v166 = vadd.f32 %v49, %v165
  %v167 = vpop.f32.mrb[0].mxu0
  %168 = vmatprep.mubr.f32.mxu0 0.0
  %169 = vmatmul.mubr.f32.gmra.mrb[0].mxu0 %v55
  %v170 = vpop.f32.mrb[0].mxu0
  %v171 = vadd.f32 %v49, %v170
  %v172 = vpop.f32.mrb[0].mxu0
  %173 = vmatprep.mubr.f32.mxu0 0.0
  %174 = vmatmul.mubr.f32.gmra.mrb[0].mxu0 %v58
  %v175 = vpop.f32.mrb[0].mxu0
  %v176 = vadd.f32 %v49, %v175
  %v177 = vpop.f32.mrb[0].mxu0
  %178 = vmatprep.mubr.f32.mxu0 0.0
  %179 = vmatmul.mubr.f32.gmra.mrb[0].mxu0 %v61
  %v180 = vpop.f32.mrb[0].mxu0
  %v181 = vadd.f32 %v49, %v180
  %v182 = vpop.f32.mrb[0].mxu0
  %183 = vmatprep.mubr.f32.mxu0 0.0
  %184 = vmatmul.mubr.f32.gmra.mrb[0].mxu0 %v64
  %v185 = vpop.f32.mrb[0].mxu0
  %v186 = vadd.f32 %v49, %v185
  %v187 = vpop.f32.mrb[0].mxu0
  %188 = vmatprep.mubr.f32.mxu0 0.0
  %189 = vmatmul.mubr.f32.gmra.mrb[0].mxu0 %v67
  %v190 = vpop.f32.mrb[0].mxu0
  %v191 = vadd.f32 %v49, %v190
  %v192 = vpop.f32.mrb[0].mxu0
  %193 = vmatprep.mubr.f32.mxu0 0.0
  %194 = vmatmul.mubr.f32.gmra.mrb[0].mxu0 %v70
  %v195 = vpop.f32.mrb[0].mxu0
  %v196 = vadd.f32 %v49, %v195
  %v197 = vpop.f32.mrb[0].mxu0
  %198 = vmatprep.mubr.f32.mxu0 0.0
  %199 = vmatmul.mubr.f32.gmra.mrb[0].mxu0 %v73
  %v200 = vpop.f32.mrb[0].mxu0
  %v201 = vadd.f32 %v49, %v200
  %v202 = vpop.f32.mrb[0].mxu0
  %203 = vmatprep.mubr.f32.mxu0 0.0
  %204 = vmatmul.mubr.f32.gmra.mrb[0].mxu0 %v76
  %v205 = vpop.f32.mrb[0].mxu0
  %v206 = vadd.f32 %v49, %v205
  %v207 = vpop.f32.mrb[0].mxu0
  %208 = vmatprep.mubr.f32.mxu0 0.0
  %209 = vmatmul.mubr.f32.gmra.mrb[0].mxu0 %v79
  %v210 = vpop.f32.mrb[0].mxu0
  %v211 = vadd.f32 %v49, %v210
  %v212 = vpop.f32.mrb[0].mxu0
  %213 = vmatprep.mubr.f32.mxu0 0.0
  %214 = vmatmul.mubr.f32.gmra.mrb[0].mxu0 %v82
  %v215 = vpop.f32.mrb[0].mxu0
  %v216 = vadd.f32 %v49, %v215
  %v217 = vpop.f32.mrb[0].mxu0
  %218 = vmatprep.mubr.f32.mxu0 0.0
  %219 = vmatmul.mubr.f32.gmra.mrb[0].mxu0 %v85
  %v220 = vpop.f32.mrb[0].mxu0
  %v221 = vadd.f32 %v49, %v220
  %v222 = vpop.f32.mrb[0].mxu0
  %223 = vmatprep.mubr.f32.mxu0 0.0
  %224 = vmatmul.mubr.f32.gmra.mrb[0].mxu0 %v88
  %v225 = vpop.f32.mrb[0].mxu0
  %v226 = vadd.f32 %v49, %v225
  %v227 = vpop.f32.mrb[0].mxu0
  %228 = vmatprep.mubr.f32.mxu0 0.0
  %229 = vmatmul.mubr.f32.gmra.mrb[0].mxu0 %v91
  %v230 = vpop.f32.mrb[0].mxu0
  %v231 = vadd.f32 %v49, %v230
  %v232 = vpop.f32.mrb[0].mxu0
  %233 = vmatprep.mubr.f32.mxu0 0.0
  %234 = vmatmul.mubr.f32.gmra.mrb[0].mxu0 %v94
  %v235 = vpop.f32.mrb[0].mxu0
  %v236 = vadd.f32 %v49, %v235
  %v237 = vpop.f32.mrb[0].mxu0
  %238 = vmatprep.mubr.f32.mxu0 0.0
  %239 = vmatmul.mubr.f32.gmra.mrb[0].mxu0 %v97
  %v240 = vpop.f32.mrb[0].mxu0
  %v241 = vadd.f32 %v49, %v240
  %v242 = vpop.f32.mrb[0].mxu0
  %243 = vdwg.mxu0
  %vm244 = vcmask 785408
  %245 = vst.msk [vmem:[#allocation2] sm:$0xff] %vm244, %v166
  %246 = vst.msk [vmem:[#allocation2 + $0x8] sm:$0xff] %vm244, %v171
  %247 = vst.msk [vmem:[#allocation2 + $0x10] sm:$0xff] %vm244, %v176
  %248 = vst.msk [vmem:[#allocation2 + $0x18] sm:$0xff] %vm244, %v181
  %249 = vst.msk [vmem:[#allocation2 + $0x20] sm:$0xff] %vm244, %v186
  %250 = vst.msk [vmem:[#allocation2 + $0x28] sm:$0xff] %vm244, %v191
  %251 = vst.msk [vmem:[#allocation2 + $0x30] sm:$0xff] %vm244, %v196
  %252 = vst.msk [vmem:[#allocation2 + $0x38] sm:$0xff] %vm244, %v201
  %253 = vst.msk [vmem:[#allocation2 + $0x40] sm:$0xff] %vm244, %v206
  %254 = vst.msk [vmem:[#allocation2 + $0x48] sm:$0xff] %vm244, %v211
  %255 = vst.msk [vmem:[#allocation2 + $0x50] sm:$0xff] %vm244, %v216
  %256 = vst.msk [vmem:[#allocation2 + $0x58] sm:$0xff] %vm244, %v221
  %257 = vst.msk [vmem:[#allocation2 + $0x60] sm:$0xff] %vm244, %v226
  %258 = vst.msk [vmem:[#allocation2 + $0x68] sm:$0xff] %vm244, %v231
  %259 = vst.msk [vmem:[#allocation2 + $0x70] sm:$0xff] %vm244, %v236
  %260 = vst.msk [vmem:[#allocation2 + $0x78] sm:$0xff] %vm244, %v241
  %v261 = vld [vmem:[#allocation2] sm:$0xff]
  %vm262 = vcmask 261120
  %v264 = vsel %vm262, 0.0, 0
  %266 = vmatprep.subr.mxu0 0.0
  %267 = vmatpush1.msra.mxu0 %v15
  %268 = vmatprep.subr.mxu0 0.0
  %269 = vmatpush1.msra.mxu0 %v16
  %270 = vmatprep.subr.mxu0 0.0
  %271 = vmatpush1.msra.mxu0 %v17
  %272 = vmatprep.subr.mxu0 0.0
  %273 = vmatpush1.msra.mxu0 %v18
  %274 = vmatprep.subr.mxu0 0.0
  %275 = vmatpush1.msra.mxu0 0.0
  %276 = vmatprep.subr.mxu0 0.0
  %277 = vmatpush1.msra.mxu0 0.0
  %278 = vmatprep.subr.mxu0 0.0
  %279 = vmatpush1.msra.mxu0 0.0
  %280 = vmatprep.subr.mxu0 0.0
  %281 = vmatpush1.msra.mxu0 0.0
  %282 = vmatprep.subr.mxu0 0.0
  %283 = vmatpush1.msra.mxu0 0.0
  %284 = vmatprep.subr.mxu0 0.0
  %285 = vmatpush1.msra.mxu0 0.0
  %286 = vmatprep.subr.mxu0 0.0
  %287 = vmatpush1.msra.mxu0 0.0
  %288 = vmatprep.subr.mxu0 0.0
  %289 = vmatpush1.msra.mxu0 0.0
  %290 = vmatprep.subr.mxu0 0.0
  %291 = vmatpush1.msra.mxu0 0.0
  %292 = vmatprep.subr.mxu0 0.0
  %293 = vmatpush1.msra.mxu0 0.0
  %294 = vmatprep.subr.mxu0 0.0
  %295 = vmatpush1.msra.mxu0 0.0
  %296 = vmatprep.subr.mxu0 0.0
  %297 = vmatpush1.msra.mxu0 0.0
  %298 = vmatprep.subr.mxu0 0.0
  %299 = vmatpush1.msra.mxu0 0.0
  %300 = vmatprep.subr.mxu0 0.0
  %301 = vmatpush1.msra.mxu0 0.0
  %302 = vmatprep.subr.mxu0 0.0
  %303 = vmatpush1.msra.mxu0 0.0
  %304 = vmatprep.subr.mxu0 0.0
  %305 = vmatpush1.msra.mxu0 0.0
  %306 = vmatprep.subr.mxu0 0.0
  %307 = vmatpush1.msra.mxu0 0.0
  %308 = vmatprep.subr.mxu0 0.0
  %309 = vmatpush1.msra.mxu0 0.0
  %310 = vmatprep.subr.mxu0 0.0
  %311 = vmatpush1.msra.mxu0 0.0
  %312 = vmatprep.subr.mxu0 0.0
  %313 = vmatpush1.msra.mxu0 0.0
  %314 = vmatprep.subr.mxu0 0.0
  %315 = vmatpush1.msra.mxu0 0.0
  %316 = vmatprep.subr.mxu0 0.0
  %317 = vmatpush1.msra.mxu0 0.0
  %318 = vmatprep.subr.mxu0 0.0
  %319 = vmatpush1.msra.mxu0 0.0
  %320 = vmatprep.subr.mxu0 0.0
  %321 = vmatpush1.msra.mxu0 0.0
  %322 = vmatprep.subr.mxu0 0.0
  %323 = vmatpush1.msra.mxu0 0.0
  %324 = vmatprep.subr.mxu0 0.0
  %325 = vmatpush1.msra.mxu0 0.0
  %326 = vmatprep.subr.mxu0 0.0
  %327 = vmatpush1.msra.mxu0 0.0
  %328 = vmatprep.subr.mxu0 0.0
  %329 = vmatpush1.msra.mxu0 0.0
  %330 = vmatprep.mubr.f32.mxu0 0.0
  %331 = vmatmul.mubr.f32.gmra.mrb[0].mxu0 %v264
  %v332 = vpop.f32.mrb[0].mxu0
  %v333 = vadd.f32 0.0, %v332
  %v334 = vpop.f32.mrb[0].mxu0
  %335 = vdwg.mxu0
  %v336 = vadd.f32 %v261, %v333
  %v337 = vxor.u32 %v336, 2147483648
  %v338 = vmul.f32 %v337, 1.442695
  %v339 = vpow.pop %v338
  %v340 = vadd.f32 %v339, 1.0
  %v341 = vrcp.pop %v340
  %v342 = vmul.f32 1.0, %v341
  %344 = vrot.lane.b32.xlu0 %v28, 64
  %v345 = vpop.permute.xlu0 %344
  %v347 = vadd.f32 %v333, %v345
  %349 = vrot.lane.b32.xlu0 %v347, 64
  %v350 = vpop.permute.xlu0 %349
  %v352 = vmul.f32 %v342, %v350
  %354 = vrot.lane.b32.xlu0 %v352, 64
  %v355 = vpop.permute.xlu0 %354
  %v357 = vadd.f32 %v261, %v355
  %v358 = vtanh.pop %v357
  %v359 = vsub.f32 1.0, %v342
  %361 = vrot.lane.b32.xlu0 %v358, 96
  %v362 = vpop.permute.xlu0 %361
  %v364 = vmul.f32 %v359, %v362
  %v365 = vmul.f32 %v342, 0.0
  %v366 = vadd.f32 %v364, %v365
  %368 = vrot.lane.b32.xlu0 %v366, 96
  %v369 = vpop.permute.xlu0 %368
  %371 = vst.msk [vmem:[#allocation3] sm:$0xff] %vm262, %v369
  %v372 = vld [vmem:[#allocation2 + $0x8] sm:$0xff]
  %v373 = vsel %vm262, %v369, 0
  %375 = vmatprep.subr.mxu0 0.0
  %376 = vmatpush1.msra.mxu0 %v15
  %377 = vmatprep.subr.mxu0 0.0
  %378 = vmatpush1.msra.mxu0 %v16
  %379 = vmatprep.subr.mxu0 0.0
  %380 = vmatpush1.msra.mxu0 %v17
  %381 = vmatprep.subr.mxu0 0.0
  %382 = vmatpush1.msra.mxu0 %v18
  %383 = vmatprep.subr.mxu0 0.0
  %384 = vmatpush1.msra.mxu0 0.0
  %385 = vmatprep.subr.mxu0 0.0
  %386 = vmatpush1.msra.mxu0 0.0
  %387 = vmatprep.subr.mxu0 0.0
  %388 = vmatpush1.msra.mxu0 0.0
  %389 = vmatprep.subr.mxu0 0.0
  %390 = vmatpush1.msra.mxu0 0.0
  %391 = vmatprep.subr.mxu0 0.0
  %392 = vmatpush1.msra.mxu0 0.0
  %393 = vmatprep.subr.mxu0 0.0
  %394 = vmatpush1.msra.mxu0 0.0
  %395 = vmatprep.subr.mxu0 0.0
  %396 = vmatpush1.msra.mxu0 0.0
  %397 = vmatprep.subr.mxu0 0.0
  %398 = vmatpush1.msra.mxu0 0.0
  %399 = vmatprep.subr.mxu0 0.0
  %400 = vmatpush1.msra.mxu0 0.0
  %401 = vmatprep.subr.mxu0 0.0
  %402 = vmatpush1.msra.mxu0 0.0
  %403 = vmatprep.subr.mxu0 0.0
  %404 = vmatpush1.msra.mxu0 0.0
  %405 = vmatprep.subr.mxu0 0.0
  %406 = vmatpush1.msra.mxu0 0.0
  %407 = vmatprep.subr.mxu0 0.0
  %408 = vmatpush1.msra.mxu0 0.0
  %409 = vmatprep.subr.mxu0 0.0
  %410 = vmatpush1.msra.mxu0 0.0
  %411 = vmatprep.subr.mxu0 0.0
  %412 = vmatpush1.msra.mxu0 0.0
  %413 = vmatprep.subr.mxu0 0.0
  %414 = vmatpush1.msra.mxu0 0.0
  %415 = vmatprep.subr.mxu0 0.0
  %416 = vmatpush1.msra.mxu0 0.0
  %417 = vmatprep.subr.mxu0 0.0
  %418 = vmatpush1.msra.mxu0 0.0
  %419 = vmatprep.subr.mxu0 0.0
  %420 = vmatpush1.msra.mxu0 0.0
  %421 = vmatprep.subr.mxu0 0.0
  %422 = vmatpush1.msra.mxu0 0.0
  %423 = vmatprep.subr.mxu0 0.0
  %424 = vmatpush1.msra.mxu0 0.0
  %425 = vmatprep.subr.mxu0 0.0
  %426 = vmatpush1.msra.mxu0 0.0
  %427 = vmatprep.subr.mxu0 0.0
  %428 = vmatpush1.msra.mxu0 0.0
  %429 = vmatprep.subr.mxu0 0.0
  %430 = vmatpush1.msra.mxu0 0.0
  %431 = vmatprep.subr.mxu0 0.0
  %432 = vmatpush1.msra.mxu0 0.0
  %433 = vmatprep.subr.mxu0 0.0
  %434 = vmatpush1.msra.mxu0 0.0
  %435 = vmatprep.subr.mxu0 0.0
  %436 = vmatpush1.msra.mxu0 0.0
  %437 = vmatprep.subr.mxu0 0.0
  %438 = vmatpush1.msra.mxu0 0.0
  %439 = vmatprep.mubr.f32.mxu0 0.0
  %440 = vmatmul.mubr.f32.gmra.mrb[0].mxu0 %v373
  %v441 = vpop.f32.mrb[0].mxu0
  %v442 = vadd.f32 0.0, %v441
  %v443 = vpop.f32.mrb[0].mxu0
  %444 = vdwg.mxu0
  %v445 = vadd.f32 %v372, %v442
  %v446 = vxor.u32 %v445, 2147483648
  %v447 = vmul.f32 %v446, 1.442695
  %v448 = vpow.pop %v447
  %v449 = vadd.f32 %v448, 1.0
  %v450 = vrcp.pop %v449
  %v451 = vmul.f32 1.0, %v450
  %v452 = vadd.f32 %v442, %v345
  %454 = vrot.lane.b32.xlu0 %v452, 64
  %v455 = vpop.permute.xlu0 %454
  %v457 = vmul.f32 %v451, %v455
  %459 = vrot.lane.b32.xlu0 %v457, 64
  %v460 = vpop.permute.xlu0 %459
  %v462 = vadd.f32 %v372, %v460
  %v463 = vtanh.pop %v462
  %v464 = vsub.f32 1.0, %v451
  %466 = vrot.lane.b32.xlu0 %v463, 96
  %v467 = vpop.permute.xlu0 %466
  %v469 = vmul.f32 %v464, %v467
  %v470 = vmul.f32 %v451, %v366
  %v471 = vadd.f32 %v469, %v470
  %473 = vrot.lane.b32.xlu0 %v471, 96
  %v474 = vpop.permute.xlu0 %473
  %476 = vst.msk [vmem:[#allocation3 + $0x8] sm:$0xff] %vm262, %v474
  %v477 = vld [vmem:[#allocation2 + $0x10] sm:$0xff]
  %v478 = vsel %vm262, %v474, 0
  %480 = vmatprep.subr.mxu0 0.0
  %481 = vmatpush1.msra.mxu0 %v15
  %482 = vmatprep.subr.mxu0 0.0
  %483 = vmatpush1.msra.mxu0 %v16
  %484 = vmatprep.subr.mxu0 0.0
  %485 = vmatpush1.msra.mxu0 %v17
  %486 = vmatprep.subr.mxu0 0.0
  %487 = vmatpush1.msra.mxu0 %v18
  %488 = vmatprep.subr.mxu0 0.0
  %489 = vmatpush1.msra.mxu0 0.0
  %490 = vmatprep.subr.mxu0 0.0
  %491 = vmatpush1.msra.mxu0 0.0
  %492 = vmatprep.subr.mxu0 0.0
  %493 = vmatpush1.msra.mxu0 0.0
  %494 = vmatprep.subr.mxu0 0.0
  %495 = vmatpush1.msra.mxu0 0.0
  %496 = vmatprep.subr.mxu0 0.0
  %497 = vmatpush1.msra.mxu0 0.0
  %498 = vmatprep.subr.mxu0 0.0
  %499 = vmatpush1.msra.mxu0 0.0
  %500 = vmatprep.subr.mxu0 0.0
  %501 = vmatpush1.msra.mxu0 0.0
  %502 = vmatprep.subr.mxu0 0.0
  %503 = vmatpush1.msra.mxu0 0.0
  %504 = vmatprep.subr.mxu0 0.0
  %505 = vmatpush1.msra.mxu0 0.0
  %506 = vmatprep.subr.mxu0 0.0
  %507 = vmatpush1.msra.mxu0 0.0
  %508 = vmatprep.subr.mxu0 0.0
  %509 = vmatpush1.msra.mxu0 0.0
  %510 = vmatprep.subr.mxu0 0.0
  %511 = vmatpush1.msra.mxu0 0.0
  %512 = vmatprep.subr.mxu0 0.0
  %513 = vmatpush1.msra.mxu0 0.0
  %514 = vmatprep.subr.mxu0 0.0
  %515 = vmatpush1.msra.mxu0 0.0
  %516 = vmatprep.subr.mxu0 0.0
  %517 = vmatpush1.msra.mxu0 0.0
  %518 = vmatprep.subr.mxu0 0.0
  %519 = vmatpush1.msra.mxu0 0.0
  %520 = vmatprep.subr.mxu0 0.0
  %521 = vmatpush1.msra.mxu0 0.0
  %522 = vmatprep.subr.mxu0 0.0
  %523 = vmatpush1.msra.mxu0 0.0
  %524 = vmatprep.subr.mxu0 0.0
  %525 = vmatpush1.msra.mxu0 0.0
  %526 = vmatprep.subr.mxu0 0.0
  %527 = vmatpush1.msra.mxu0 0.0
  %528 = vmatprep.subr.mxu0 0.0
  %529 = vmatpush1.msra.mxu0 0.0
  %530 = vmatprep.subr.mxu0 0.0
  %531 = vmatpush1.msra.mxu0 0.0
  %532 = vmatprep.subr.mxu0 0.0
  %533 = vmatpush1.msra.mxu0 0.0
  %534 = vmatprep.subr.mxu0 0.0
  %535 = vmatpush1.msra.mxu0 0.0
  %536 = vmatprep.subr.mxu0 0.0
  %537 = vmatpush1.msra.mxu0 0.0
  %538 = vmatprep.subr.mxu0 0.0
  %539 = vmatpush1.msra.mxu0 0.0
  %540 = vmatprep.subr.mxu0 0.0
  %541 = vmatpush1.msra.mxu0 0.0
  %542 = vmatprep.subr.mxu0 0.0
  %543 = vmatpush1.msra.mxu0 0.0
  %544 = vmatprep.mubr.f32.mxu0 0.0
  %545 = vmatmul.mubr.f32.gmra.mrb[0].mxu0 %v478
  %v546 = vpop.f32.mrb[0].mxu0
  %v547 = vadd.f32 0.0, %v546
  %v548 = vpop.f32.mrb[0].mxu0
  %549 = vdwg.mxu0
  %v550 = vadd.f32 %v477, %v547
  %v551 = vxor.u32 %v550, 2147483648
  %v552 = vmul.f32 %v551, 1.442695
  %v553 = vpow.pop %v552
  %v554 = vadd.f32 %v553, 1.0
  %v555 = vrcp.pop %v554
  %v556 = vmul.f32 1.0, %v555
  %v557 = vadd.f32 %v547, %v345
  %559 = vrot.lane.b32.xlu0 %v557, 64
  %v560 = vpop.permute.xlu0 %559
  %v562 = vmul.f32 %v556, %v560
  %564 = vrot.lane.b32.xlu0 %v562, 64
  %v565 = vpop.permute.xlu0 %564
  %v567 = vadd.f32 %v477, %v565
  %v568 = vtanh.pop %v567
  %v569 = vsub.f32 1.0, %v556
  %571 = vrot.lane.b32.xlu0 %v568, 96
  %v572 = vpop.permute.xlu0 %571
  %v574 = vmul.f32 %v569, %v572
  %v575 = vmul.f32 %v556, %v471
  %v576 = vadd.f32 %v574, %v575
  %578 = vrot.lane.b32.xlu0 %v576, 96
  %v579 = vpop.permute.xlu0 %578
  %581 = vst.msk [vmem:[#allocation3 + $0x10] sm:$0xff] %vm262, %v579
  %v582 = vld [vmem:[#allocation2 + $0x18] sm:$0xff]
  %v583 = vsel %vm262, %v579, 0
  %585 = vmatprep.subr.mxu0 0.0
  %586 = vmatpush1.msra.mxu0 %v15
  %587 = vmatprep.subr.mxu0 0.0
  %588 = vmatpush1.msra.mxu0 %v16
  %589 = vmatprep.subr.mxu0 0.0
  %590 = vmatpush1.msra.mxu0 %v17
  %591 = vmatprep.subr.mxu0 0.0
  %592 = vmatpush1.msra.mxu0 %v18
  %593 = vmatprep.subr.mxu0 0.0
  %594 = vmatpush1.msra.mxu0 0.0
  %595 = vmatprep.subr.mxu0 0.0
  %596 = vmatpush1.msra.mxu0 0.0
  %597 = vmatprep.subr.mxu0 0.0
  %598 = vmatpush1.msra.mxu0 0.0
  %599 = vmatprep.subr.mxu0 0.0
  %600 = vmatpush1.msra.mxu0 0.0
  %601 = vmatprep.subr.mxu0 0.0
  %602 = vmatpush1.msra.mxu0 0.0
  %603 = vmatprep.subr.mxu0 0.0
  %604 = vmatpush1.msra.mxu0 0.0
  %605 = vmatprep.subr.mxu0 0.0
  %606 = vmatpush1.msra.mxu0 0.0
  %607 = vmatprep.subr.mxu0 0.0
  %608 = vmatpush1.msra.mxu0 0.0
  %609 = vmatprep.subr.mxu0 0.0
  %610 = vmatpush1.msra.mxu0 0.0
  %611 = vmatprep.subr.mxu0 0.0
  %612 = vmatpush1.msra.mxu0 0.0
  %613 = vmatprep.subr.mxu0 0.0
  %614 = vmatpush1.msra.mxu0 0.0
  %615 = vmatprep.subr.mxu0 0.0
  %616 = vmatpush1.msra.mxu0 0.0
  %617 = vmatprep.subr.mxu0 0.0
  %618 = vmatpush1.msra.mxu0 0.0
  %619 = vmatprep.subr.mxu0 0.0
  %620 = vmatpush1.msra.mxu0 0.0
  %621 = vmatprep.subr.mxu0 0.0
  %622 = vmatpush1.msra.mxu0 0.0
  %623 = vmatprep.subr.mxu0 0.0
  %624 = vmatpush1.msra.mxu0 0.0
  %625 = vmatprep.subr.mxu0 0.0
  %626 = vmatpush1.msra.mxu0 0.0
  %627 = vmatprep.subr.mxu0 0.0
  %628 = vmatpush1.msra.mxu0 0.0
  %629 = vmatprep.subr.mxu0 0.0
  %630 = vmatpush1.msra.mxu0 0.0
  %631 = vmatprep.subr.mxu0 0.0
  %632 = vmatpush1.msra.mxu0 0.0
  %633 = vmatprep.subr.mxu0 0.0
  %634 = vmatpush1.msra.mxu0 0.0
  %635 = vmatprep.subr.mxu0 0.0
  %636 = vmatpush1.msra.mxu0 0.0
  %637 = vmatprep.subr.mxu0 0.0
  %638 = vmatpush1.msra.mxu0 0.0
  %639 = vmatprep.subr.mxu0 0.0
  %640 = vmatpush1.msra.mxu0 0.0
  %641 = vmatprep.subr.mxu0 0.0
  %642 = vmatpush1.msra.mxu0 0.0
  %643 = vmatprep.subr.mxu0 0.0
  %644 = vmatpush1.msra.mxu0 0.0
  %645 = vmatprep.subr.mxu0 0.0
  %646 = vmatpush1.msra.mxu0 0.0
  %647 = vmatprep.subr.mxu0 0.0
  %648 = vmatpush1.msra.mxu0 0.0
  %649 = vmatprep.mubr.f32.mxu0 0.0
  %650 = vmatmul.mubr.f32.gmra.mrb[0].mxu0 %v583
  %v651 = vpop.f32.mrb[0].mxu0
  %v652 = vadd.f32 0.0, %v651
  %v653 = vpop.f32.mrb[0].mxu0
  %654 = vdwg.mxu0
  %v655 = vadd.f32 %v582, %v652
  %v656 = vxor.u32 %v655, 2147483648
  %v657 = vmul.f32 %v656, 1.442695
  %v658 = vpow.pop %v657
  %v659 = vadd.f32 %v658, 1.0
  %v660 = vrcp.pop %v659
  %v661 = vmul.f32 1.0, %v660
  %v662 = vadd.f32 %v652, %v345
  %664 = vrot.lane.b32.xlu0 %v662, 64
  %v665 = vpop.permute.xlu0 %664
  %v667 = vmul.f32 %v661, %v665
  %669 = vrot.lane.b32.xlu0 %v667, 64
  %v670 = vpop.permute.xlu0 %669
  %v672 = vadd.f32 %v582, %v670
  %v673 = vtanh.pop %v672
  %v674 = vsub.f32 1.0, %v661
  %676 = vrot.lane.b32.xlu0 %v673, 96
  %v677 = vpop.permute.xlu0 %676
  %v679 = vmul.f32 %v674, %v677
  %v680 = vmul.f32 %v661, %v576
  %v681 = vadd.f32 %v679, %v680
  %683 = vrot.lane.b32.xlu0 %v681, 96
  %v684 = vpop.permute.xlu0 %683
  %686 = vst.msk [vmem:[#allocation3 + $0x18] sm:$0xff] %vm262, %v684
  %v687 = vld [vmem:[#allocation2 + $0x20] sm:$0xff]
  %v688 = vsel %vm262, %v684, 0
  %690 = vmatprep.subr.mxu0 0.0
  %691 = vmatpush1.msra.mxu0 %v15
  %692 = vmatprep.subr.mxu0 0.0
  %693 = vmatpush1.msra.mxu0 %v16
  %694 = vmatprep.subr.mxu0 0.0
  %695 = vmatpush1.msra.mxu0 %v17
  %696 = vmatprep.subr.mxu0 0.0
  %697 = vmatpush1.msra.mxu0 %v18
  %698 = vmatprep.subr.mxu0 0.0
  %699 = vmatpush1.msra.mxu0 0.0
  %700 = vmatprep.subr.mxu0 0.0
  %701 = vmatpush1.msra.mxu0 0.0
  %702 = vmatprep.subr.mxu0 0.0
  %703 = vmatpush1.msra.mxu0 0.0
  %704 = vmatprep.subr.mxu0 0.0
  %705 = vmatpush1.msra.mxu0 0.0
  %706 = vmatprep.subr.mxu0 0.0
  %707 = vmatpush1.msra.mxu0 0.0
  %708 = vmatprep.subr.mxu0 0.0
  %709 = vmatpush1.msra.mxu0 0.0
  %710 = vmatprep.subr.mxu0 0.0
  %711 = vmatpush1.msra.mxu0 0.0
  %712 = vmatprep.subr.mxu0 0.0
  %713 = vmatpush1.msra.mxu0 0.0
  %714 = vmatprep.subr.mxu0 0.0
  %715 = vmatpush1.msra.mxu0 0.0
  %716 = vmatprep.subr.mxu0 0.0
  %717 = vmatpush1.msra.mxu0 0.0
  %718 = vmatprep.subr.mxu0 0.0
  %719 = vmatpush1.msra.mxu0 0.0
  %720 = vmatprep.subr.mxu0 0.0
  %721 = vmatpush1.msra.mxu0 0.0
  %722 = vmatprep.subr.mxu0 0.0
  %723 = vmatpush1.msra.mxu0 0.0
  %724 = vmatprep.subr.mxu0 0.0
  %725 = vmatpush1.msra.mxu0 0.0
  %726 = vmatprep.subr.mxu0 0.0
  %727 = vmatpush1.msra.mxu0 0.0
  %728 = vmatprep.subr.mxu0 0.0
  %729 = vmatpush1.msra.mxu0 0.0
  %730 = vmatprep.subr.mxu0 0.0
  %731 = vmatpush1.msra.mxu0 0.0
  %732 = vmatprep.subr.mxu0 0.0
  %733 = vmatpush1.msra.mxu0 0.0
  %734 = vmatprep.subr.mxu0 0.0
  %735 = vmatpush1.msra.mxu0 0.0
  %736 = vmatprep.subr.mxu0 0.0
  %737 = vmatpush1.msra.mxu0 0.0
  %738 = vmatprep.subr.mxu0 0.0
  %739 = vmatpush1.msra.mxu0 0.0
  %740 = vmatprep.subr.mxu0 0.0
  %741 = vmatpush1.msra.mxu0 0.0
  %742 = vmatprep.subr.mxu0 0.0
  %743 = vmatpush1.msra.mxu0 0.0
  %744 = vmatprep.subr.mxu0 0.0
  %745 = vmatpush1.msra.mxu0 0.0
  %746 = vmatprep.subr.mxu0 0.0
  %747 = vmatpush1.msra.mxu0 0.0
  %748 = vmatprep.subr.mxu0 0.0
  %749 = vmatpush1.msra.mxu0 0.0
  %750 = vmatprep.subr.mxu0 0.0
  %751 = vmatpush1.msra.mxu0 0.0
  %752 = vmatprep.subr.mxu0 0.0
  %753 = vmatpush1.msra.mxu0 0.0
  %754 = vmatprep.mubr.f32.mxu0 0.0
  %755 = vmatmul.mubr.f32.gmra.mrb[0].mxu0 %v688
  %v756 = vpop.f32.mrb[0].mxu0
  %v757 = vadd.f32 0.0, %v756
  %v758 = vpop.f32.mrb[0].mxu0
  %759 = vdwg.mxu0
  %v760 = vadd.f32 %v687, %v757
  %v761 = vxor.u32 %v760, 2147483648
  %v762 = vmul.f32 %v761, 1.442695
  %v763 = vpow.pop %v762
  %v764 = vadd.f32 %v763, 1.0
  %v765 = vrcp.pop %v764
  %v766 = vmul.f32 1.0, %v765
  %v767 = vadd.f32 %v757, %v345
  %769 = vrot.lane.b32.xlu0 %v767, 64
  %v770 = vpop.permute.xlu0 %769
  %v772 = vmul.f32 %v766, %v770
  %774 = vrot.lane.b32.xlu0 %v772, 64
  %v775 = vpop.permute.xlu0 %774
  %v777 = vadd.f32 %v687, %v775
  %v778 = vtanh.pop %v777
  %v779 = vsub.f32 1.0, %v766
  %781 = vrot.lane.b32.xlu0 %v778, 96
  %v782 = vpop.permute.xlu0 %781
  %v784 = vmul.f32 %v779, %v782
  %v785 = vmul.f32 %v766, %v681
  %v786 = vadd.f32 %v784, %v785
  %788 = vrot.lane.b32.xlu0 %v786, 96
  %v789 = vpop.permute.xlu0 %788
  %791 = vst.msk [vmem:[#allocation3 + $0x20] sm:$0xff] %vm262, %v789
  %v792 = vld [vmem:[#allocation2 + $0x28] sm:$0xff]
  %v793 = vsel %vm262, %v789, 0
  %795 = vmatprep.subr.mxu0 0.0
  %796 = vmatpush1.msra.mxu0 %v15
  %797 = vmatprep.subr.mxu0 0.0
  %798 = vmatpush1.msra.mxu0 %v16
  %799 = vmatprep.subr.mxu0 0.0
  %800 = vmatpush1.msra.mxu0 %v17
  %801 = vmatprep.subr.mxu0 0.0
  %802 = vmatpush1.msra.mxu0 %v18
  %803 = vmatprep.subr.mxu0 0.0
  %804 = vmatpush1.msra.mxu0 0.0
  %805 = vmatprep.subr.mxu0 0.0
  %806 = vmatpush1.msra.mxu0 0.0
  %807 = vmatprep.subr.mxu0 0.0
  %808 = vmatpush1.msra.mxu0 0.0
  %809 = vmatprep.subr.mxu0 0.0
  %810 = vmatpush1.msra.mxu0 0.0
  %811 = vmatprep.subr.mxu0 0.0
  %812 = vmatpush1.msra.mxu0 0.0
  %813 = vmatprep.subr.mxu0 0.0
  %814 = vmatpush1.msra.mxu0 0.0
  %815 = vmatprep.subr.mxu0 0.0
  %816 = vmatpush1.msra.mxu0 0.0
  %817 = vmatprep.subr.mxu0 0.0
  %818 = vmatpush1.msra.mxu0 0.0
  %819 = vmatprep.subr.mxu0 0.0
  %820 = vmatpush1.msra.mxu0 0.0
  %821 = vmatprep.subr.mxu0 0.0
  %822 = vmatpush1.msra.mxu0 0.0
  %823 = vmatprep.subr.mxu0 0.0
  %824 = vmatpush1.msra.mxu0 0.0
  %825 = vmatprep.subr.mxu0 0.0
  %826 = vmatpush1.msra.mxu0 0.0
  %827 = vmatprep.subr.mxu0 0.0
  %828 = vmatpush1.msra.mxu0 0.0
  %829 = vmatprep.subr.mxu0 0.0
  %830 = vmatpush1.msra.mxu0 0.0
  %831 = vmatprep.subr.mxu0 0.0
  %832 = vmatpush1.msra.mxu0 0.0
  %833 = vmatprep.subr.mxu0 0.0
  %834 = vmatpush1.msra.mxu0 0.0
  %835 = vmatprep.subr.mxu0 0.0
  %836 = vmatpush1.msra.mxu0 0.0
  %837 = vmatprep.subr.mxu0 0.0
  %838 = vmatpush1.msra.mxu0 0.0
  %839 = vmatprep.subr.mxu0 0.0
  %840 = vmatpush1.msra.mxu0 0.0
  %841 = vmatprep.subr.mxu0 0.0
  %842 = vmatpush1.msra.mxu0 0.0
  %843 = vmatprep.subr.mxu0 0.0
  %844 = vmatpush1.msra.mxu0 0.0
  %845 = vmatprep.subr.mxu0 0.0
  %846 = vmatpush1.msra.mxu0 0.0
  %847 = vmatprep.subr.mxu0 0.0
  %848 = vmatpush1.msra.mxu0 0.0
  %849 = vmatprep.subr.mxu0 0.0
  %850 = vmatpush1.msra.mxu0 0.0
  %851 = vmatprep.subr.mxu0 0.0
  %852 = vmatpush1.msra.mxu0 0.0
  %853 = vmatprep.subr.mxu0 0.0
  %854 = vmatpush1.msra.mxu0 0.0
  %855 = vmatprep.subr.mxu0 0.0
  %856 = vmatpush1.msra.mxu0 0.0
  %857 = vmatprep.subr.mxu0 0.0
  %858 = vmatpush1.msra.mxu0 0.0
  %859 = vmatprep.mubr.f32.mxu0 0.0
  %860 = vmatmul.mubr.f32.gmra.mrb[0].mxu0 %v793
  %v861 = vpop.f32.mrb[0].mxu0
  %v862 = vadd.f32 0.0, %v861
  %v863 = vpop.f32.mrb[0].mxu0
  %864 = vdwg.mxu0
  %v865 = vadd.f32 %v792, %v862
  %v866 = vxor.u32 %v865, 2147483648
  %v867 = vmul.f32 %v866, 1.442695
  %v868 = vpow.pop %v867
  %v869 = vadd.f32 %v868, 1.0
  %v870 = vrcp.pop %v869
  %v871 = vmul.f32 1.0, %v870
  %v872 = vadd.f32 %v862, %v345
  %874 = vrot.lane.b32.xlu0 %v872, 64
  %v875 = vpop.permute.xlu0 %874
  %v877 = vmul.f32 %v871, %v875
  %879 = vrot.lane.b32.xlu0 %v877, 64
  %v880 = vpop.permute.xlu0 %879
  %v882 = vadd.f32 %v792, %v880
  %v883 = vtanh.pop %v882
  %v884 = vsub.f32 1.0, %v871
  %886 = vrot.lane.b32.xlu0 %v883, 96
  %v887 = vpop.permute.xlu0 %886
  %v889 = vmul.f32 %v884, %v887
  %v890 = vmul.f32 %v871, %v786
  %v891 = vadd.f32 %v889, %v890
  %893 = vrot.lane.b32.xlu0 %v891, 96
  %v894 = vpop.permute.xlu0 %893
  %896 = vst.msk [vmem:[#allocation3 + $0x28] sm:$0xff] %vm262, %v894
  %v897 = vld [vmem:[#allocation2 + $0x30] sm:$0xff]
  %v898 = vsel %vm262, %v894, 0
  %900 = vmatprep.subr.mxu0 0.0
  %901 = vmatpush1.msra.mxu0 %v15
  %902 = vmatprep.subr.mxu0 0.0
  %903 = vmatpush1.msra.mxu0 %v16
  %904 = vmatprep.subr.mxu0 0.0
  %905 = vmatpush1.msra.mxu0 %v17
  %906 = vmatprep.subr.mxu0 0.0
  %907 = vmatpush1.msra.mxu0 %v18
  %908 = vmatprep.subr.mxu0 0.0
  %909 = vmatpush1.msra.mxu0 0.0
  %910 = vmatprep.subr.mxu0 0.0
  %911 = vmatpush1.msra.mxu0 0.0
  %912 = vmatprep.subr.mxu0 0.0
  %913 = vmatpush1.msra.mxu0 0.0
  %914 = vmatprep.subr.mxu0 0.0
  %915 = vmatpush1.msra.mxu0 0.0
  %916 = vmatprep.subr.mxu0 0.0
  %917 = vmatpush1.msra.mxu0 0.0
  %918 = vmatprep.subr.mxu0 0.0
  %919 = vmatpush1.msra.mxu0 0.0
  %920 = vmatprep.subr.mxu0 0.0
  %921 = vmatpush1.msra.mxu0 0.0
  %922 = vmatprep.subr.mxu0 0.0
  %923 = vmatpush1.msra.mxu0 0.0
  %924 = vmatprep.subr.mxu0 0.0
  %925 = vmatpush1.msra.mxu0 0.0
  %926 = vmatprep.subr.mxu0 0.0
  %927 = vmatpush1.msra.mxu0 0.0
  %928 = vmatprep.subr.mxu0 0.0
  %929 = vmatpush1.msra.mxu0 0.0
  %930 = vmatprep.subr.mxu0 0.0
  %931 = vmatpush1.msra.mxu0 0.0
  %932 = vmatprep.subr.mxu0 0.0
  %933 = vmatpush1.msra.mxu0 0.0
  %934 = vmatprep.subr.mxu0 0.0
  %935 = vmatpush1.msra.mxu0 0.0
  %936 = vmatprep.subr.mxu0 0.0
  %937 = vmatpush1.msra.mxu0 0.0
  %938 = vmatprep.subr.mxu0 0.0
  %939 = vmatpush1.msra.mxu0 0.0
  %940 = vmatprep.subr.mxu0 0.0
  %941 = vmatpush1.msra.mxu0 0.0
  %942 = vmatprep.subr.mxu0 0.0
  %943 = vmatpush1.msra.mxu0 0.0
  %944 = vmatprep.subr.mxu0 0.0
  %945 = vmatpush1.msra.mxu0 0.0
  %946 = vmatprep.subr.mxu0 0.0
  %947 = vmatpush1.msra.mxu0 0.0
  %948 = vmatprep.subr.mxu0 0.0
  %949 = vmatpush1.msra.mxu0 0.0
  %950 = vmatprep.subr.mxu0 0.0
  %951 = vmatpush1.msra.mxu0 0.0
  %952 = vmatprep.subr.mxu0 0.0
  %953 = vmatpush1.msra.mxu0 0.0
  %954 = vmatprep.subr.mxu0 0.0
  %955 = vmatpush1.msra.mxu0 0.0
  %956 = vmatprep.subr.mxu0 0.0
  %957 = vmatpush1.msra.mxu0 0.0
  %958 = vmatprep.subr.mxu0 0.0
  %959 = vmatpush1.msra.mxu0 0.0
  %960 = vmatprep.subr.mxu0 0.0
  %961 = vmatpush1.msra.mxu0 0.0
  %962 = vmatprep.subr.mxu0 0.0
  %963 = vmatpush1.msra.mxu0 0.0
  %964 = vmatprep.mubr.f32.mxu0 0.0
  %965 = vmatmul.mubr.f32.gmra.mrb[0].mxu0 %v898
  %v966 = vpop.f32.mrb[0].mxu0
  %v967 = vadd.f32 0.0, %v966
  %v968 = vpop.f32.mrb[0].mxu0
  %969 = vdwg.mxu0
  %v970 = vadd.f32 %v897, %v967
  %v971 = vxor.u32 %v970, 2147483648
  %v972 = vmul.f32 %v971, 1.442695
  %v973 = vpow.pop %v972
  %v974 = vadd.f32 %v973, 1.0
  %v975 = vrcp.pop %v974
  %v976 = vmul.f32 1.0, %v975
  %v977 = vadd.f32 %v967, %v345
  %979 = vrot.lane.b32.xlu0 %v977, 64
  %v980 = vpop.permute.xlu0 %979
  %v982 = vmul.f32 %v976, %v980
  %984 = vrot.lane.b32.xlu0 %v982, 64
  %v985 = vpop.permute.xlu0 %984
  %v987 = vadd.f32 %v897, %v985
  %v988 = vtanh.pop %v987
  %v989 = vsub.f32 1.0, %v976
  %991 = vrot.lane.b32.xlu0 %v988, 96
  %v992 = vpop.permute.xlu0 %991
  %v994 = vmul.f32 %v989, %v992
  %v995 = vmul.f32 %v976, %v891
  %v996 = vadd.f32 %v994, %v995
  %998 = vrot.lane.b32.xlu0 %v996, 96
  %v999 = vpop.permute.xlu0 %998
  %1001 = vst.msk [vmem:[#allocation3 + $0x30] sm:$0xff] %vm262, %v999
  %v1002 = vld [vmem:[#allocation2 + $0x38] sm:$0xff]
  %v1003 = vsel %vm262, %v999, 0
  %1005 = vmatprep.subr.mxu0 0.0
  %1006 = vmatpush1.msra.mxu0 %v15
  %1007 = vmatprep.subr.mxu0 0.0
  %1008 = vmatpush1.msra.mxu0 %v16
  %1009 = vmatprep.subr.mxu0 0.0
  %1010 = vmatpush1.msra.mxu0 %v17
  %1011 = vmatprep.subr.mxu0 0.0
  %1012 = vmatpush1.msra.mxu0 %v18
  %1013 = vmatprep.subr.mxu0 0.0
  %1014 = vmatpush1.msra.mxu0 0.0
  %1015 = vmatprep.subr.mxu0 0.0
  %1016 = vmatpush1.msra.mxu0 0.0
  %1017 = vmatprep.subr.mxu0 0.0
  %1018 = vmatpush1.msra.mxu0 0.0
  %1019 = vmatprep.subr.mxu0 0.0
  %1020 = vmatpush1.msra.mxu0 0.0
  %1021 = vmatprep.subr.mxu0 0.0
  %1022 = vmatpush1.msra.mxu0 0.0
  %1023 = vmatprep.subr.mxu0 0.0
  %1024 = vmatpush1.msra.mxu0 0.0
  %1025 = vmatprep.subr.mxu0 0.0
  %1026 = vmatpush1.msra.mxu0 0.0
  %1027 = vmatprep.subr.mxu0 0.0
  %1028 = vmatpush1.msra.mxu0 0.0
  %1029 = vmatprep.subr.mxu0 0.0
  %1030 = vmatpush1.msra.mxu0 0.0
  %1031 = vmatprep.subr.mxu0 0.0
  %1032 = vmatpush1.msra.mxu0 0.0
  %1033 = vmatprep.subr.mxu0 0.0
  %1034 = vmatpush1.msra.mxu0 0.0
  %1035 = vmatprep.subr.mxu0 0.0
  %1036 = vmatpush1.msra.mxu0 0.0
  %1037 = vmatprep.subr.mxu0 0.0
  %1038 = vmatpush1.msra.mxu0 0.0
  %1039 = vmatprep.subr.mxu0 0.0
  %1040 = vmatpush1.msra.mxu0 0.0
  %1041 = vmatprep.subr.mxu0 0.0
  %1042 = vmatpush1.msra.mxu0 0.0
  %1043 = vmatprep.subr.mxu0 0.0
  %1044 = vmatpush1.msra.mxu0 0.0
  %1045 = vmatprep.subr.mxu0 0.0
  %1046 = vmatpush1.msra.mxu0 0.0
  %1047 = vmatprep.subr.mxu0 0.0
  %1048 = vmatpush1.msra.mxu0 0.0
  %1049 = vmatprep.subr.mxu0 0.0
  %1050 = vmatpush1.msra.mxu0 0.0
  %1051 = vmatprep.subr.mxu0 0.0
  %1052 = vmatpush1.msra.mxu0 0.0
  %1053 = vmatprep.subr.mxu0 0.0
  %1054 = vmatpush1.msra.mxu0 0.0
  %1055 = vmatprep.subr.mxu0 0.0
  %1056 = vmatpush1.msra.mxu0 0.0
  %1057 = vmatprep.subr.mxu0 0.0
  %1058 = vmatpush1.msra.mxu0 0.0
  %1059 = vmatprep.subr.mxu0 0.0
  %1060 = vmatpush1.msra.mxu0 0.0
  %1061 = vmatprep.subr.mxu0 0.0
  %1062 = vmatpush1.msra.mxu0 0.0
  %1063 = vmatprep.subr.mxu0 0.0
  %1064 = vmatpush1.msra.mxu0 0.0
  %1065 = vmatprep.subr.mxu0 0.0
  %1066 = vmatpush1.msra.mxu0 0.0
  %1067 = vmatprep.subr.mxu0 0.0
  %1068 = vmatpush1.msra.mxu0 0.0
  %1069 = vmatprep.mubr.f32.mxu0 0.0
  %1070 = vmatmul.mubr.f32.gmra.mrb[0].mxu0 %v1003
  %v1071 = vpop.f32.mrb[0].mxu0
  %v1072 = vadd.f32 0.0, %v1071
  %v1073 = vpop.f32.mrb[0].mxu0
  %1074 = vdwg.mxu0
  %v1075 = vadd.f32 %v1002, %v1072
  %v1076 = vxor.u32 %v1075, 2147483648
  %v1077 = vmul.f32 %v1076, 1.442695
  %v1078 = vpow.pop %v1077
  %v1079 = vadd.f32 %v1078, 1.0
  %v1080 = vrcp.pop %v1079
  %v1081 = vmul.f32 1.0, %v1080
  %v1082 = vadd.f32 %v1072, %v345
  %1084 = vrot.lane.b32.xlu0 %v1082, 64
  %v1085 = vpop.permute.xlu0 %1084
  %v1087 = vmul.f32 %v1081, %v1085
  %1089 = vrot.lane.b32.xlu0 %v1087, 64
  %v1090 = vpop.permute.xlu0 %1089
  %v1092 = vadd.f32 %v1002, %v1090
  %v1093 = vtanh.pop %v1092
  %v1094 = vsub.f32 1.0, %v1081
  %1096 = vrot.lane.b32.xlu0 %v1093, 96
  %v1097 = vpop.permute.xlu0 %1096
  %v1099 = vmul.f32 %v1094, %v1097
  %v1100 = vmul.f32 %v1081, %v996
  %v1101 = vadd.f32 %v1099, %v1100
  %1103 = vrot.lane.b32.xlu0 %v1101, 96
  %v1104 = vpop.permute.xlu0 %1103
  %1106 = vst.msk [vmem:[#allocation3 + $0x38] sm:$0xff] %vm262, %v1104
  %v1107 = vld [vmem:[#allocation2 + $0x40] sm:$0xff]
  %v1108 = vsel %vm262, %v1104, 0
  %1110 = vmatprep.subr.mxu0 0.0
  %1111 = vmatpush1.msra.mxu0 %v15
  %1112 = vmatprep.subr.mxu0 0.0
  %1113 = vmatpush1.msra.mxu0 %v16
  %1114 = vmatprep.subr.mxu0 0.0
  %1115 = vmatpush1.msra.mxu0 %v17
  %1116 = vmatprep.subr.mxu0 0.0
  %1117 = vmatpush1.msra.mxu0 %v18
  %1118 = vmatprep.subr.mxu0 0.0
  %1119 = vmatpush1.msra.mxu0 0.0
  %1120 = vmatprep.subr.mxu0 0.0
  %1121 = vmatpush1.msra.mxu0 0.0
  %1122 = vmatprep.subr.mxu0 0.0
  %1123 = vmatpush1.msra.mxu0 0.0
  %1124 = vmatprep.subr.mxu0 0.0
  %1125 = vmatpush1.msra.mxu0 0.0
  %1126 = vmatprep.subr.mxu0 0.0
  %1127 = vmatpush1.msra.mxu0 0.0
  %1128 = vmatprep.subr.mxu0 0.0
  %1129 = vmatpush1.msra.mxu0 0.0
  %1130 = vmatprep.subr.mxu0 0.0
  %1131 = vmatpush1.msra.mxu0 0.0
  %1132 = vmatprep.subr.mxu0 0.0
  %1133 = vmatpush1.msra.mxu0 0.0
  %1134 = vmatprep.subr.mxu0 0.0
  %1135 = vmatpush1.msra.mxu0 0.0
  %1136 = vmatprep.subr.mxu0 0.0
  %1137 = vmatpush1.msra.mxu0 0.0
  %1138 = vmatprep.subr.mxu0 0.0
  %1139 = vmatpush1.msra.mxu0 0.0
  %1140 = vmatprep.subr.mxu0 0.0
  %1141 = vmatpush1.msra.mxu0 0.0
  %1142 = vmatprep.subr.mxu0 0.0
  %1143 = vmatpush1.msra.mxu0 0.0
  %1144 = vmatprep.subr.mxu0 0.0
  %1145 = vmatpush1.msra.mxu0 0.0
  %1146 = vmatprep.subr.mxu0 0.0
  %1147 = vmatpush1.msra.mxu0 0.0
  %1148 = vmatprep.subr.mxu0 0.0
  %1149 = vmatpush1.msra.mxu0 0.0
  %1150 = vmatprep.subr.mxu0 0.0
  %1151 = vmatpush1.msra.mxu0 0.0
  %1152 = vmatprep.subr.mxu0 0.0
  %1153 = vmatpush1.msra.mxu0 0.0
  %1154 = vmatprep.subr.mxu0 0.0
  %1155 = vmatpush1.msra.mxu0 0.0
  %1156 = vmatprep.subr.mxu0 0.0
  %1157 = vmatpush1.msra.mxu0 0.0
  %1158 = vmatprep.subr.mxu0 0.0
  %1159 = vmatpush1.msra.mxu0 0.0
  %1160 = vmatprep.subr.mxu0 0.0
  %1161 = vmatpush1.msra.mxu0 0.0
  %1162 = vmatprep.subr.mxu0 0.0
  %1163 = vmatpush1.msra.mxu0 0.0
  %1164 = vmatprep.subr.mxu0 0.0
  %1165 = vmatpush1.msra.mxu0 0.0
  %1166 = vmatprep.subr.mxu0 0.0
  %1167 = vmatpush1.msra.mxu0 0.0
  %1168 = vmatprep.subr.mxu0 0.0
  %1169 = vmatpush1.msra.mxu0 0.0
  %1170 = vmatprep.subr.mxu0 0.0
  %1171 = vmatpush1.msra.mxu0 0.0
  %1172 = vmatprep.subr.mxu0 0.0
  %1173 = vmatpush1.msra.mxu0 0.0
  %1174 = vmatprep.mubr.f32.mxu0 0.0
  %1175 = vmatmul.mubr.f32.gmra.mrb[0].mxu0 %v1108
  %v1176 = vpop.f32.mrb[0].mxu0
  %v1177 = vadd.f32 0.0, %v1176
  %v1178 = vpop.f32.mrb[0].mxu0
  %1179 = vdwg.mxu0
  %v1180 = vadd.f32 %v1107, %v1177
  %v1181 = vxor.u32 %v1180, 2147483648
  %v1182 = vmul.f32 %v1181, 1.442695
  %v1183 = vpow.pop %v1182
  %v1184 = vadd.f32 %v1183, 1.0
  %v1185 = vrcp.pop %v1184
  %v1186 = vmul.f32 1.0, %v1185
  %v1187 = vadd.f32 %v1177, %v345
  %1189 = vrot.lane.b32.xlu0 %v1187, 64
  %v1190 = vpop.permute.xlu0 %1189
  %v1192 = vmul.f32 %v1186, %v1190
  %1194 = vrot.lane.b32.xlu0 %v1192, 64
  %v1195 = vpop.permute.xlu0 %1194
  %v1197 = vadd.f32 %v1107, %v1195
  %v1198 = vtanh.pop %v1197
  %v1199 = vsub.f32 1.0, %v1186
  %1201 = vrot.lane.b32.xlu0 %v1198, 96
  %v1202 = vpop.permute.xlu0 %1201
  %v1204 = vmul.f32 %v1199, %v1202
  %v1205 = vmul.f32 %v1186, %v1101
  %v1206 = vadd.f32 %v1204, %v1205
  %1208 = vrot.lane.b32.xlu0 %v1206, 96
  %v1209 = vpop.permute.xlu0 %1208
  %1211 = vst.msk [vmem:[#allocation3 + $0x40] sm:$0xff] %vm262, %v1209
  %v1212 = vld [vmem:[#allocation2 + $0x48] sm:$0xff]
  %v1213 = vsel %vm262, %v1209, 0
  %1215 = vmatprep.subr.mxu0 0.0
  %1216 = vmatpush1.msra.mxu0 %v15
  %1217 = vmatprep.subr.mxu0 0.0
  %1218 = vmatpush1.msra.mxu0 %v16
  %1219 = vmatprep.subr.mxu0 0.0
  %1220 = vmatpush1.msra.mxu0 %v17
  %1221 = vmatprep.subr.mxu0 0.0
  %1222 = vmatpush1.msra.mxu0 %v18
  %1223 = vmatprep.subr.mxu0 0.0
  %1224 = vmatpush1.msra.mxu0 0.0
  %1225 = vmatprep.subr.mxu0 0.0
  %1226 = vmatpush1.msra.mxu0 0.0
  %1227 = vmatprep.subr.mxu0 0.0
  %1228 = vmatpush1.msra.mxu0 0.0
  %1229 = vmatprep.subr.mxu0 0.0
  %1230 = vmatpush1.msra.mxu0 0.0
  %1231 = vmatprep.subr.mxu0 0.0
  %1232 = vmatpush1.msra.mxu0 0.0
  %1233 = vmatprep.subr.mxu0 0.0
  %1234 = vmatpush1.msra.mxu0 0.0
  %1235 = vmatprep.subr.mxu0 0.0
  %1236 = vmatpush1.msra.mxu0 0.0
  %1237 = vmatprep.subr.mxu0 0.0
  %1238 = vmatpush1.msra.mxu0 0.0
  %1239 = vmatprep.subr.mxu0 0.0
  %1240 = vmatpush1.msra.mxu0 0.0
  %1241 = vmatprep.subr.mxu0 0.0
  %1242 = vmatpush1.msra.mxu0 0.0
  %1243 = vmatprep.subr.mxu0 0.0
  %1244 = vmatpush1.msra.mxu0 0.0
  %1245 = vmatprep.subr.mxu0 0.0
  %1246 = vmatpush1.msra.mxu0 0.0
  %1247 = vmatprep.subr.mxu0 0.0
  %1248 = vmatpush1.msra.mxu0 0.0
  %1249 = vmatprep.subr.mxu0 0.0
  %1250 = vmatpush1.msra.mxu0 0.0
  %1251 = vmatprep.subr.mxu0 0.0
  %1252 = vmatpush1.msra.mxu0 0.0
  %1253 = vmatprep.subr.mxu0 0.0
  %1254 = vmatpush1.msra.mxu0 0.0
  %1255 = vmatprep.subr.mxu0 0.0
  %1256 = vmatpush1.msra.mxu0 0.0
  %1257 = vmatprep.subr.mxu0 0.0
  %1258 = vmatpush1.msra.mxu0 0.0
  %1259 = vmatprep.subr.mxu0 0.0
  %1260 = vmatpush1.msra.mxu0 0.0
  %1261 = vmatprep.subr.mxu0 0.0
  %1262 = vmatpush1.msra.mxu0 0.0
  %1263 = vmatprep.subr.mxu0 0.0
  %1264 = vmatpush1.msra.mxu0 0.0
  %1265 = vmatprep.subr.mxu0 0.0
  %1266 = vmatpush1.msra.mxu0 0.0
  %1267 = vmatprep.subr.mxu0 0.0
  %1268 = vmatpush1.msra.mxu0 0.0
  %1269 = vmatprep.subr.mxu0 0.0
  %1270 = vmatpush1.msra.mxu0 0.0
  %1271 = vmatprep.subr.mxu0 0.0
  %1272 = vmatpush1.msra.mxu0 0.0
  %1273 = vmatprep.subr.mxu0 0.0
  %1274 = vmatpush1.msra.mxu0 0.0
  %1275 = vmatprep.subr.mxu0 0.0
  %1276 = vmatpush1.msra.mxu0 0.0
  %1277 = vmatprep.subr.mxu0 0.0
  %1278 = vmatpush1.msra.mxu0 0.0
  %1279 = vmatprep.mubr.f32.mxu0 0.0
  %1280 = vmatmul.mubr.f32.gmra.mrb[0].mxu0 %v1213
  %v1281 = vpop.f32.mrb[0].mxu0
  %v1282 = vadd.f32 0.0, %v1281
  %v1283 = vpop.f32.mrb[0].mxu0
  %1284 = vdwg.mxu0
  %v1285 = vadd.f32 %v1212, %v1282
  %v1286 = vxor.u32 %v1285, 2147483648
  %v1287 = vmul.f32 %v1286, 1.442695
  %v1288 = vpow.pop %v1287
  %v1289 = vadd.f32 %v1288, 1.0
  %v1290 = vrcp.pop %v1289
  %v1291 = vmul.f32 1.0, %v1290
  %v1292 = vadd.f32 %v1282, %v345
  %1294 = vrot.lane.b32.xlu0 %v1292, 64
  %v1295 = vpop.permute.xlu0 %1294
  %v1297 = vmul.f32 %v1291, %v1295
  %1299 = vrot.lane.b32.xlu0 %v1297, 64
  %v1300 = vpop.permute.xlu0 %1299
  %v1302 = vadd.f32 %v1212, %v1300
  %v1303 = vtanh.pop %v1302
  %v1304 = vsub.f32 1.0, %v1291
  %1306 = vrot.lane.b32.xlu0 %v1303, 96
  %v1307 = vpop.permute.xlu0 %1306
  %v1309 = vmul.f32 %v1304, %v1307
  %v1310 = vmul.f32 %v1291, %v1206
  %v1311 = vadd.f32 %v1309, %v1310
  %1313 = vrot.lane.b32.xlu0 %v1311, 96
  %v1314 = vpop.permute.xlu0 %1313
  %1316 = vst.msk [vmem:[#allocation3 + $0x48] sm:$0xff] %vm262, %v1314
  %v1317 = vld [vmem:[#allocation2 + $0x50] sm:$0xff]
  %v1318 = vsel %vm262, %v1314, 0
  %1320 = vmatprep.subr.mxu0 0.0
  %1321 = vmatpush1.msra.mxu0 %v15
  %1322 = vmatprep.subr.mxu0 0.0
  %1323 = vmatpush1.msra.mxu0 %v16
  %1324 = vmatprep.subr.mxu0 0.0
  %1325 = vmatpush1.msra.mxu0 %v17
  %1326 = vmatprep.subr.mxu0 0.0
  %1327 = vmatpush1.msra.mxu0 %v18
  %1328 = vmatprep.subr.mxu0 0.0
  %1329 = vmatpush1.msra.mxu0 0.0
  %1330 = vmatprep.subr.mxu0 0.0
  %1331 = vmatpush1.msra.mxu0 0.0
  %1332 = vmatprep.subr.mxu0 0.0
  %1333 = vmatpush1.msra.mxu0 0.0
  %1334 = vmatprep.subr.mxu0 0.0
  %1335 = vmatpush1.msra.mxu0 0.0
  %1336 = vmatprep.subr.mxu0 0.0
  %1337 = vmatpush1.msra.mxu0 0.0
  %1338 = vmatprep.subr.mxu0 0.0
  %1339 = vmatpush1.msra.mxu0 0.0
  %1340 = vmatprep.subr.mxu0 0.0
  %1341 = vmatpush1.msra.mxu0 0.0
  %1342 = vmatprep.subr.mxu0 0.0
  %1343 = vmatpush1.msra.mxu0 0.0
  %1344 = vmatprep.subr.mxu0 0.0
  %1345 = vmatpush1.msra.mxu0 0.0
  %1346 = vmatprep.subr.mxu0 0.0
  %1347 = vmatpush1.msra.mxu0 0.0
  %1348 = vmatprep.subr.mxu0 0.0
  %1349 = vmatpush1.msra.mxu0 0.0
  %1350 = vmatprep.subr.mxu0 0.0
  %1351 = vmatpush1.msra.mxu0 0.0
  %1352 = vmatprep.subr.mxu0 0.0
  %1353 = vmatpush1.msra.mxu0 0.0
  %1354 = vmatprep.subr.mxu0 0.0
  %1355 = vmatpush1.msra.mxu0 0.0
  %1356 = vmatprep.subr.mxu0 0.0
  %1357 = vmatpush1.msra.mxu0 0.0
  %1358 = vmatprep.subr.mxu0 0.0
  %1359 = vmatpush1.msra.mxu0 0.0
  %1360 = vmatprep.subr.mxu0 0.0
  %1361 = vmatpush1.msra.mxu0 0.0
  %1362 = vmatprep.subr.mxu0 0.0
  %1363 = vmatpush1.msra.mxu0 0.0
  %1364 = vmatprep.subr.mxu0 0.0
  %1365 = vmatpush1.msra.mxu0 0.0
  %1366 = vmatprep.subr.mxu0 0.0
  %1367 = vmatpush1.msra.mxu0 0.0
  %1368 = vmatprep.subr.mxu0 0.0
  %1369 = vmatpush1.msra.mxu0 0.0
  %1370 = vmatprep.subr.mxu0 0.0
  %1371 = vmatpush1.msra.mxu0 0.0
  %1372 = vmatprep.subr.mxu0 0.0
  %1373 = vmatpush1.msra.mxu0 0.0
  %1374 = vmatprep.subr.mxu0 0.0
  %1375 = vmatpush1.msra.mxu0 0.0
  %1376 = vmatprep.subr.mxu0 0.0
  %1377 = vmatpush1.msra.mxu0 0.0
  %1378 = vmatprep.subr.mxu0 0.0
  %1379 = vmatpush1.msra.mxu0 0.0
  %1380 = vmatprep.subr.mxu0 0.0
  %1381 = vmatpush1.msra.mxu0 0.0
  %1382 = vmatprep.subr.mxu0 0.0
  %1383 = vmatpush1.msra.mxu0 0.0
  %1384 = vmatprep.mubr.f32.mxu0 0.0
  %1385 = vmatmul.mubr.f32.gmra.mrb[0].mxu0 %v1318
  %v1386 = vpop.f32.mrb[0].mxu0
  %v1387 = vadd.f32 0.0, %v1386
  %v1388 = vpop.f32.mrb[0].mxu0
  %1389 = vdwg.mxu0
  %v1390 = vadd.f32 %v1317, %v1387
  %v1391 = vxor.u32 %v1390, 2147483648
  %v1392 = vmul.f32 %v1391, 1.442695
  %v1393 = vpow.pop %v1392
  %v1394 = vadd.f32 %v1393, 1.0
  %v1395 = vrcp.pop %v1394
  %v1396 = vmul.f32 1.0, %v1395
  %v1397 = vadd.f32 %v1387, %v345
  %1399 = vrot.lane.b32.xlu0 %v1397, 64
  %v1400 = vpop.permute.xlu0 %1399
  %v1402 = vmul.f32 %v1396, %v1400
  %1404 = vrot.lane.b32.xlu0 %v1402, 64
  %v1405 = vpop.permute.xlu0 %1404
  %v1407 = vadd.f32 %v1317, %v1405
  %v1408 = vtanh.pop %v1407
  %v1409 = vsub.f32 1.0, %v1396
  %1411 = vrot.lane.b32.xlu0 %v1408, 96
  %v1412 = vpop.permute.xlu0 %1411
  %v1414 = vmul.f32 %v1409, %v1412
  %v1415 = vmul.f32 %v1396, %v1311
  %v1416 = vadd.f32 %v1414, %v1415
  %1418 = vrot.lane.b32.xlu0 %v1416, 96
  %v1419 = vpop.permute.xlu0 %1418
  %1421 = vst.msk [vmem:[#allocation3 + $0x50] sm:$0xff] %vm262, %v1419
  %v1422 = vld [vmem:[#allocation2 + $0x58] sm:$0xff]
  %v1423 = vsel %vm262, %v1419, 0
  %1425 = vmatprep.subr.mxu0 0.0
  %1426 = vmatpush1.msra.mxu0 %v15
  %1427 = vmatprep.subr.mxu0 0.0
  %1428 = vmatpush1.msra.mxu0 %v16
  %1429 = vmatprep.subr.mxu0 0.0
  %1430 = vmatpush1.msra.mxu0 %v17
  %1431 = vmatprep.subr.mxu0 0.0
  %1432 = vmatpush1.msra.mxu0 %v18
  %1433 = vmatprep.subr.mxu0 0.0
  %1434 = vmatpush1.msra.mxu0 0.0
  %1435 = vmatprep.subr.mxu0 0.0
  %1436 = vmatpush1.msra.mxu0 0.0
  %1437 = vmatprep.subr.mxu0 0.0
  %1438 = vmatpush1.msra.mxu0 0.0
  %1439 = vmatprep.subr.mxu0 0.0
  %1440 = vmatpush1.msra.mxu0 0.0
  %1441 = vmatprep.subr.mxu0 0.0
  %1442 = vmatpush1.msra.mxu0 0.0
  %1443 = vmatprep.subr.mxu0 0.0
  %1444 = vmatpush1.msra.mxu0 0.0
  %1445 = vmatprep.subr.mxu0 0.0
  %1446 = vmatpush1.msra.mxu0 0.0
  %1447 = vmatprep.subr.mxu0 0.0
  %1448 = vmatpush1.msra.mxu0 0.0
  %1449 = vmatprep.subr.mxu0 0.0
  %1450 = vmatpush1.msra.mxu0 0.0
  %1451 = vmatprep.subr.mxu0 0.0
  %1452 = vmatpush1.msra.mxu0 0.0
  %1453 = vmatprep.subr.mxu0 0.0
  %1454 = vmatpush1.msra.mxu0 0.0
  %1455 = vmatprep.subr.mxu0 0.0
  %1456 = vmatpush1.msra.mxu0 0.0
  %1457 = vmatprep.subr.mxu0 0.0
  %1458 = vmatpush1.msra.mxu0 0.0
  %1459 = vmatprep.subr.mxu0 0.0
  %1460 = vmatpush1.msra.mxu0 0.0
  %1461 = vmatprep.subr.mxu0 0.0
  %1462 = vmatpush1.msra.mxu0 0.0
  %1463 = vmatprep.subr.mxu0 0.0
  %1464 = vmatpush1.msra.mxu0 0.0
  %1465 = vmatprep.subr.mxu0 0.0
  %1466 = vmatpush1.msra.mxu0 0.0
  %1467 = vmatprep.subr.mxu0 0.0
  %1468 = vmatpush1.msra.mxu0 0.0
  %1469 = vmatprep.subr.mxu0 0.0
  %1470 = vmatpush1.msra.mxu0 0.0
  %1471 = vmatprep.subr.mxu0 0.0
  %1472 = vmatpush1.msra.mxu0 0.0
  %1473 = vmatprep.subr.mxu0 0.0
  %1474 = vmatpush1.msra.mxu0 0.0
  %1475 = vmatprep.subr.mxu0 0.0
  %1476 = vmatpush1.msra.mxu0 0.0
  %1477 = vmatprep.subr.mxu0 0.0
  %1478 = vmatpush1.msra.mxu0 0.0
  %1479 = vmatprep.subr.mxu0 0.0
  %1480 = vmatpush1.msra.mxu0 0.0
  %1481 = vmatprep.subr.mxu0 0.0
  %1482 = vmatpush1.msra.mxu0 0.0
  %1483 = vmatprep.subr.mxu0 0.0
  %1484 = vmatpush1.msra.mxu0 0.0
  %1485 = vmatprep.subr.mxu0 0.0
  %1486 = vmatpush1.msra.mxu0 0.0
  %1487 = vmatprep.subr.mxu0 0.0
  %1488 = vmatpush1.msra.mxu0 0.0
  %1489 = vmatprep.mubr.f32.mxu0 0.0
  %1490 = vmatmul.mubr.f32.gmra.mrb[0].mxu0 %v1423
  %v1491 = vpop.f32.mrb[0].mxu0
  %v1492 = vadd.f32 0.0, %v1491
  %v1493 = vpop.f32.mrb[0].mxu0
  %1494 = vdwg.mxu0
  %v1495 = vadd.f32 %v1422, %v1492
  %v1496 = vxor.u32 %v1495, 2147483648
  %v1497 = vmul.f32 %v1496, 1.442695
  %v1498 = vpow.pop %v1497
  %v1499 = vadd.f32 %v1498, 1.0
  %v1500 = vrcp.pop %v1499
  %v1501 = vmul.f32 1.0, %v1500
  %v1502 = vadd.f32 %v1492, %v345
  %1504 = vrot.lane.b32.xlu0 %v1502, 64
  %v1505 = vpop.permute.xlu0 %1504
  %v1507 = vmul.f32 %v1501, %v1505
  %1509 = vrot.lane.b32.xlu0 %v1507, 64
  %v1510 = vpop.permute.xlu0 %1509
  %v1512 = vadd.f32 %v1422, %v1510
  %v1513 = vtanh.pop %v1512
  %v1514 = vsub.f32 1.0, %v1501
  %1516 = vrot.lane.b32.xlu0 %v1513, 96
  %v1517 = vpop.permute.xlu0 %1516
  %v1519 = vmul.f32 %v1514, %v1517
  %v1520 = vmul.f32 %v1501, %v1416
  %v1521 = vadd.f32 %v1519, %v1520
  %1523 = vrot.lane.b32.xlu0 %v1521, 96
  %v1524 = vpop.permute.xlu0 %1523
  %1526 = vst.msk [vmem:[#allocation3 + $0x58] sm:$0xff] %vm262, %v1524
  %v1527 = vld [vmem:[#allocation2 + $0x60] sm:$0xff]
  %v1528 = vsel %vm262, %v1524, 0
  %1530 = vmatprep.subr.mxu0 0.0
  %1531 = vmatpush1.msra.mxu0 %v15
  %1532 = vmatprep.subr.mxu0 0.0
  %1533 = vmatpush1.msra.mxu0 %v16
  %1534 = vmatprep.subr.mxu0 0.0
  %1535 = vmatpush1.msra.mxu0 %v17
  %1536 = vmatprep.subr.mxu0 0.0
  %1537 = vmatpush1.msra.mxu0 %v18
  %1538 = vmatprep.subr.mxu0 0.0
  %1539 = vmatpush1.msra.mxu0 0.0
  %1540 = vmatprep.subr.mxu0 0.0
  %1541 = vmatpush1.msra.mxu0 0.0
  %1542 = vmatprep.subr.mxu0 0.0
  %1543 = vmatpush1.msra.mxu0 0.0
  %1544 = vmatprep.subr.mxu0 0.0
  %1545 = vmatpush1.msra.mxu0 0.0
  %1546 = vmatprep.subr.mxu0 0.0
  %1547 = vmatpush1.msra.mxu0 0.0
  %1548 = vmatprep.subr.mxu0 0.0
  %1549 = vmatpush1.msra.mxu0 0.0
  %1550 = vmatprep.subr.mxu0 0.0
  %1551 = vmatpush1.msra.mxu0 0.0
  %1552 = vmatprep.subr.mxu0 0.0
  %1553 = vmatpush1.msra.mxu0 0.0
  %1554 = vmatprep.subr.mxu0 0.0
  %1555 = vmatpush1.msra.mxu0 0.0
  %1556 = vmatprep.subr.mxu0 0.0
  %1557 = vmatpush1.msra.mxu0 0.0
  %1558 = vmatprep.subr.mxu0 0.0
  %1559 = vmatpush1.msra.mxu0 0.0
  %1560 = vmatprep.subr.mxu0 0.0
  %1561 = vmatpush1.msra.mxu0 0.0
  %1562 = vmatprep.subr.mxu0 0.0
  %1563 = vmatpush1.msra.mxu0 0.0
  %1564 = vmatprep.subr.mxu0 0.0
  %1565 = vmatpush1.msra.mxu0 0.0
  %1566 = vmatprep.subr.mxu0 0.0
  %1567 = vmatpush1.msra.mxu0 0.0
  %1568 = vmatprep.subr.mxu0 0.0
  %1569 = vmatpush1.msra.mxu0 0.0
  %1570 = vmatprep.subr.mxu0 0.0
  %1571 = vmatpush1.msra.mxu0 0.0
  %1572 = vmatprep.subr.mxu0 0.0
  %1573 = vmatpush1.msra.mxu0 0.0
  %1574 = vmatprep.subr.mxu0 0.0
  %1575 = vmatpush1.msra.mxu0 0.0
  %1576 = vmatprep.subr.mxu0 0.0
  %1577 = vmatpush1.msra.mxu0 0.0
  %1578 = vmatprep.subr.mxu0 0.0
  %1579 = vmatpush1.msra.mxu0 0.0
  %1580 = vmatprep.subr.mxu0 0.0
  %1581 = vmatpush1.msra.mxu0 0.0
  %1582 = vmatprep.subr.mxu0 0.0
  %1583 = vmatpush1.msra.mxu0 0.0
  %1584 = vmatprep.subr.mxu0 0.0
  %1585 = vmatpush1.msra.mxu0 0.0
  %1586 = vmatprep.subr.mxu0 0.0
  %1587 = vmatpush1.msra.mxu0 0.0
  %1588 = vmatprep.subr.mxu0 0.0
  %1589 = vmatpush1.msra.mxu0 0.0
  %1590 = vmatprep.subr.mxu0 0.0
  %1591 = vmatpush1.msra.mxu0 0.0
  %1592 = vmatprep.subr.mxu0 0.0
  %1593 = vmatpush1.msra.mxu0 0.0
  %1594 = vmatprep.mubr.f32.mxu0 0.0
  %1595 = vmatmul.mubr.f32.gmra.mrb[0].mxu0 %v1528
  %v1596 = vpop.f32.mrb[0].mxu0
  %v1597 = vadd.f32 0.0, %v1596
  %v1598 = vpop.f32.mrb[0].mxu0
  %1599 = vdwg.mxu0
  %v1600 = vadd.f32 %v1527, %v1597
  %v1601 = vxor.u32 %v1600, 2147483648
  %v1602 = vmul.f32 %v1601, 1.442695
  %v1603 = vpow.pop %v1602
  %v1604 = vadd.f32 %v1603, 1.0
  %v1605 = vrcp.pop %v1604
  %v1606 = vmul.f32 1.0, %v1605
  %v1607 = vadd.f32 %v1597, %v345
  %1609 = vrot.lane.b32.xlu0 %v1607, 64
  %v1610 = vpop.permute.xlu0 %1609
  %v1612 = vmul.f32 %v1606, %v1610
  %1614 = vrot.lane.b32.xlu0 %v1612, 64
  %v1615 = vpop.permute.xlu0 %1614
  %v1617 = vadd.f32 %v1527, %v1615
  %v1618 = vtanh.pop %v1617
  %v1619 = vsub.f32 1.0, %v1606
  %1621 = vrot.lane.b32.xlu0 %v1618, 96
  %v1622 = vpop.permute.xlu0 %1621
  %v1624 = vmul.f32 %v1619, %v1622
  %v1625 = vmul.f32 %v1606, %v1521
  %v1626 = vadd.f32 %v1624, %v1625
  %1628 = vrot.lane.b32.xlu0 %v1626, 96
  %v1629 = vpop.permute.xlu0 %1628
  %1631 = vst.msk [vmem:[#allocation3 + $0x60] sm:$0xff] %vm262, %v1629
  %v1632 = vld [vmem:[#allocation2 + $0x68] sm:$0xff]
  %v1633 = vsel %vm262, %v1629, 0
  %1635 = vmatprep.subr.mxu0 0.0
  %1636 = vmatpush1.msra.mxu0 %v15
  %1637 = vmatprep.subr.mxu0 0.0
  %1638 = vmatpush1.msra.mxu0 %v16
  %1639 = vmatprep.subr.mxu0 0.0
  %1640 = vmatpush1.msra.mxu0 %v17
  %1641 = vmatprep.subr.mxu0 0.0
  %1642 = vmatpush1.msra.mxu0 %v18
  %1643 = vmatprep.subr.mxu0 0.0
  %1644 = vmatpush1.msra.mxu0 0.0
  %1645 = vmatprep.subr.mxu0 0.0
  %1646 = vmatpush1.msra.mxu0 0.0
  %1647 = vmatprep.subr.mxu0 0.0
  %1648 = vmatpush1.msra.mxu0 0.0
  %1649 = vmatprep.subr.mxu0 0.0
  %1650 = vmatpush1.msra.mxu0 0.0
  %1651 = vmatprep.subr.mxu0 0.0
  %1652 = vmatpush1.msra.mxu0 0.0
  %1653 = vmatprep.subr.mxu0 0.0
  %1654 = vmatpush1.msra.mxu0 0.0
  %1655 = vmatprep.subr.mxu0 0.0
  %1656 = vmatpush1.msra.mxu0 0.0
  %1657 = vmatprep.subr.mxu0 0.0
  %1658 = vmatpush1.msra.mxu0 0.0
  %1659 = vmatprep.subr.mxu0 0.0
  %1660 = vmatpush1.msra.mxu0 0.0
  %1661 = vmatprep.subr.mxu0 0.0
  %1662 = vmatpush1.msra.mxu0 0.0
  %1663 = vmatprep.subr.mxu0 0.0
  %1664 = vmatpush1.msra.mxu0 0.0
  %1665 = vmatprep.subr.mxu0 0.0
  %1666 = vmatpush1.msra.mxu0 0.0
  %1667 = vmatprep.subr.mxu0 0.0
  %1668 = vmatpush1.msra.mxu0 0.0
  %1669 = vmatprep.subr.mxu0 0.0
  %1670 = vmatpush1.msra.mxu0 0.0
  %1671 = vmatprep.subr.mxu0 0.0
  %1672 = vmatpush1.msra.mxu0 0.0
  %1673 = vmatprep.subr.mxu0 0.0
  %1674 = vmatpush1.msra.mxu0 0.0
  %1675 = vmatprep.subr.mxu0 0.0
  %1676 = vmatpush1.msra.mxu0 0.0
  %1677 = vmatprep.subr.mxu0 0.0
  %1678 = vmatpush1.msra.mxu0 0.0
  %1679 = vmatprep.subr.mxu0 0.0
  %1680 = vmatpush1.msra.mxu0 0.0
  %1681 = vmatprep.subr.mxu0 0.0
  %1682 = vmatpush1.msra.mxu0 0.0
  %1683 = vmatprep.subr.mxu0 0.0
  %1684 = vmatpush1.msra.mxu0 0.0
  %1685 = vmatprep.subr.mxu0 0.0
  %1686 = vmatpush1.msra.mxu0 0.0
  %1687 = vmatprep.subr.mxu0 0.0
  %1688 = vmatpush1.msra.mxu0 0.0
  %1689 = vmatprep.subr.mxu0 0.0
  %1690 = vmatpush1.msra.mxu0 0.0
  %1691 = vmatprep.subr.mxu0 0.0
  %1692 = vmatpush1.msra.mxu0 0.0
  %1693 = vmatprep.subr.mxu0 0.0
  %1694 = vmatpush1.msra.mxu0 0.0
  %1695 = vmatprep.subr.mxu0 0.0
  %1696 = vmatpush1.msra.mxu0 0.0
  %1697 = vmatprep.subr.mxu0 0.0
  %1698 = vmatpush1.msra.mxu0 0.0
  %1699 = vmatprep.mubr.f32.mxu0 0.0
  %1700 = vmatmul.mubr.f32.gmra.mrb[0].mxu0 %v1633
  %v1701 = vpop.f32.mrb[0].mxu0
  %v1702 = vadd.f32 0.0, %v1701
  %v1703 = vpop.f32.mrb[0].mxu0
  %1704 = vdwg.mxu0
  %v1705 = vadd.f32 %v1632, %v1702
  %v1706 = vxor.u32 %v1705, 2147483648
  %v1707 = vmul.f32 %v1706, 1.442695
  %v1708 = vpow.pop %v1707
  %v1709 = vadd.f32 %v1708, 1.0
  %v1710 = vrcp.pop %v1709
  %v1711 = vmul.f32 1.0, %v1710
  %v1712 = vadd.f32 %v1702, %v345
  %1714 = vrot.lane.b32.xlu0 %v1712, 64
  %v1715 = vpop.permute.xlu0 %1714
  %v1717 = vmul.f32 %v1711, %v1715
  %1719 = vrot.lane.b32.xlu0 %v1717, 64
  %v1720 = vpop.permute.xlu0 %1719
  %v1722 = vadd.f32 %v1632, %v1720
  %v1723 = vtanh.pop %v1722
  %v1724 = vsub.f32 1.0, %v1711
  %1726 = vrot.lane.b32.xlu0 %v1723, 96
  %v1727 = vpop.permute.xlu0 %1726
  %v1729 = vmul.f32 %v1724, %v1727
  %v1730 = vmul.f32 %v1711, %v1626
  %v1731 = vadd.f32 %v1729, %v1730
  %1733 = vrot.lane.b32.xlu0 %v1731, 96
  %v1734 = vpop.permute.xlu0 %1733
  %1736 = vst.msk [vmem:[#allocation3 + $0x68] sm:$0xff] %vm262, %v1734
  %v1737 = vld [vmem:[#allocation2 + $0x70] sm:$0xff]
  %v1738 = vsel %vm262, %v1734, 0
  %1740 = vmatprep.subr.mxu0 0.0
  %1741 = vmatpush1.msra.mxu0 %v15
  %1742 = vmatprep.subr.mxu0 0.0
  %1743 = vmatpush1.msra.mxu0 %v16
  %1744 = vmatprep.subr.mxu0 0.0
  %1745 = vmatpush1.msra.mxu0 %v17
  %1746 = vmatprep.subr.mxu0 0.0
  %1747 = vmatpush1.msra.mxu0 %v18
  %1748 = vmatprep.subr.mxu0 0.0
  %1749 = vmatpush1.msra.mxu0 0.0
  %1750 = vmatprep.subr.mxu0 0.0
  %1751 = vmatpush1.msra.mxu0 0.0
  %1752 = vmatprep.subr.mxu0 0.0
  %1753 = vmatpush1.msra.mxu0 0.0
  %1754 = vmatprep.subr.mxu0 0.0
  %1755 = vmatpush1.msra.mxu0 0.0
  %1756 = vmatprep.subr.mxu0 0.0
  %1757 = vmatpush1.msra.mxu0 0.0
  %1758 = vmatprep.subr.mxu0 0.0
  %1759 = vmatpush1.msra.mxu0 0.0
  %1760 = vmatprep.subr.mxu0 0.0
  %1761 = vmatpush1.msra.mxu0 0.0
  %1762 = vmatprep.subr.mxu0 0.0
  %1763 = vmatpush1.msra.mxu0 0.0
  %1764 = vmatprep.subr.mxu0 0.0
  %1765 = vmatpush1.msra.mxu0 0.0
  %1766 = vmatprep.subr.mxu0 0.0
  %1767 = vmatpush1.msra.mxu0 0.0
  %1768 = vmatprep.subr.mxu0 0.0
  %1769 = vmatpush1.msra.mxu0 0.0
  %1770 = vmatprep.subr.mxu0 0.0
  %1771 = vmatpush1.msra.mxu0 0.0
  %1772 = vmatprep.subr.mxu0 0.0
  %1773 = vmatpush1.msra.mxu0 0.0
  %1774 = vmatprep.subr.mxu0 0.0
  %1775 = vmatpush1.msra.mxu0 0.0
  %1776 = vmatprep.subr.mxu0 0.0
  %1777 = vmatpush1.msra.mxu0 0.0
  %1778 = vmatprep.subr.mxu0 0.0
  %1779 = vmatpush1.msra.mxu0 0.0
  %1780 = vmatprep.subr.mxu0 0.0
  %1781 = vmatpush1.msra.mxu0 0.0
  %1782 = vmatprep.subr.mxu0 0.0
  %1783 = vmatpush1.msra.mxu0 0.0
  %1784 = vmatprep.subr.mxu0 0.0
  %1785 = vmatpush1.msra.mxu0 0.0
  %1786 = vmatprep.subr.mxu0 0.0
  %1787 = vmatpush1.msra.mxu0 0.0
  %1788 = vmatprep.subr.mxu0 0.0
  %1789 = vmatpush1.msra.mxu0 0.0
  %1790 = vmatprep.subr.mxu0 0.0
  %1791 = vmatpush1.msra.mxu0 0.0
  %1792 = vmatprep.subr.mxu0 0.0
  %1793 = vmatpush1.msra.mxu0 0.0
  %1794 = vmatprep.subr.mxu0 0.0
  %1795 = vmatpush1.msra.mxu0 0.0
  %1796 = vmatprep.subr.mxu0 0.0
  %1797 = vmatpush1.msra.mxu0 0.0
  %1798 = vmatprep.subr.mxu0 0.0
  %1799 = vmatpush1.msra.mxu0 0.0
  %1800 = vmatprep.subr.mxu0 0.0
  %1801 = vmatpush1.msra.mxu0 0.0
  %1802 = vmatprep.subr.mxu0 0.0
  %1803 = vmatpush1.msra.mxu0 0.0
  %1804 = vmatprep.mubr.f32.mxu0 0.0
  %1805 = vmatmul.mubr.f32.gmra.mrb[0].mxu0 %v1738
  %v1806 = vpop.f32.mrb[0].mxu0
  %v1807 = vadd.f32 0.0, %v1806
  %v1808 = vpop.f32.mrb[0].mxu0
  %1809 = vdwg.mxu0
  %v1810 = vadd.f32 %v1737, %v1807
  %v1811 = vxor.u32 %v1810, 2147483648
  %v1812 = vmul.f32 %v1811, 1.442695
  %v1813 = vpow.pop %v1812
  %v1814 = vadd.f32 %v1813, 1.0
  %v1815 = vrcp.pop %v1814
  %v1816 = vmul.f32 1.0, %v1815
  %v1817 = vadd.f32 %v1807, %v345
  %1819 = vrot.lane.b32.xlu0 %v1817, 64
  %v1820 = vpop.permute.xlu0 %1819
  %v1822 = vmul.f32 %v1816, %v1820
  %1824 = vrot.lane.b32.xlu0 %v1822, 64
  %v1825 = vpop.permute.xlu0 %1824
  %v1827 = vadd.f32 %v1737, %v1825
  %v1828 = vtanh.pop %v1827
  %v1829 = vsub.f32 1.0, %v1816
  %1831 = vrot.lane.b32.xlu0 %v1828, 96
  %v1832 = vpop.permute.xlu0 %1831
  %v1834 = vmul.f32 %v1829, %v1832
  %v1835 = vmul.f32 %v1816, %v1731
  %v1836 = vadd.f32 %v1834, %v1835
  %1838 = vrot.lane.b32.xlu0 %v1836, 96
  %v1839 = vpop.permute.xlu0 %1838
  %1841 = vst.msk [vmem:[#allocation3 + $0x70] sm:$0xff] %vm262, %v1839
  %v1842 = vld [vmem:[#allocation2 + $0x78] sm:$0xff]
  %v1843 = vsel %vm262, %v1839, 0
  %1845 = vmatprep.subr.mxu0 0.0
  %1846 = vmatpush1.msra.mxu0 %v15
  %1847 = vmatprep.subr.mxu0 0.0
  %1848 = vmatpush1.msra.mxu0 %v16
  %1849 = vmatprep.subr.mxu0 0.0
  %1850 = vmatpush1.msra.mxu0 %v17
  %1851 = vmatprep.subr.mxu0 0.0
  %1852 = vmatpush1.msra.mxu0 %v18
  %1853 = vmatprep.subr.mxu0 0.0
  %1854 = vmatpush1.msra.mxu0 0.0
  %1855 = vmatprep.subr.mxu0 0.0
  %1856 = vmatpush1.msra.mxu0 0.0
  %1857 = vmatprep.subr.mxu0 0.0
  %1858 = vmatpush1.msra.mxu0 0.0
  %1859 = vmatprep.subr.mxu0 0.0
  %1860 = vmatpush1.msra.mxu0 0.0
  %1861 = vmatprep.subr.mxu0 0.0
  %1862 = vmatpush1.msra.mxu0 0.0
  %1863 = vmatprep.subr.mxu0 0.0
  %1864 = vmatpush1.msra.mxu0 0.0
  %1865 = vmatprep.subr.mxu0 0.0
  %1866 = vmatpush1.msra.mxu0 0.0
  %1867 = vmatprep.subr.mxu0 0.0
  %1868 = vmatpush1.msra.mxu0 0.0
  %1869 = vmatprep.subr.mxu0 0.0
  %1870 = vmatpush1.msra.mxu0 0.0
  %1871 = vmatprep.subr.mxu0 0.0
  %1872 = vmatpush1.msra.mxu0 0.0
  %1873 = vmatprep.subr.mxu0 0.0
  %1874 = vmatpush1.msra.mxu0 0.0
  %1875 = vmatprep.subr.mxu0 0.0
  %1876 = vmatpush1.msra.mxu0 0.0
  %1877 = vmatprep.subr.mxu0 0.0
  %1878 = vmatpush1.msra.mxu0 0.0
  %1879 = vmatprep.subr.mxu0 0.0
  %1880 = vmatpush1.msra.mxu0 0.0
  %1881 = vmatprep.subr.mxu0 0.0
  %1882 = vmatpush1.msra.mxu0 0.0
  %1883 = vmatprep.subr.mxu0 0.0
  %1884 = vmatpush1.msra.mxu0 0.0
  %1885 = vmatprep.subr.mxu0 0.0
  %1886 = vmatpush1.msra.mxu0 0.0
  %1887 = vmatprep.subr.mxu0 0.0
  %1888 = vmatpush1.msra.mxu0 0.0
  %1889 = vmatprep.subr.mxu0 0.0
  %1890 = vmatpush1.msra.mxu0 0.0
  %1891 = vmatprep.subr.mxu0 0.0
  %1892 = vmatpush1.msra.mxu0 0.0
  %1893 = vmatprep.subr.mxu0 0.0
  %1894 = vmatpush1.msra.mxu0 0.0
  %1895 = vmatprep.subr.mxu0 0.0
  %1896 = vmatpush1.msra.mxu0 0.0
  %1897 = vmatprep.subr.mxu0 0.0
  %1898 = vmatpush1.msra.mxu0 0.0
  %1899 = vmatprep.subr.mxu0 0.0
  %1900 = vmatpush1.msra.mxu0 0.0
  %1901 = vmatprep.subr.mxu0 0.0
  %1902 = vmatpush1.msra.mxu0 0.0
  %1903 = vmatprep.subr.mxu0 0.0
  %1904 = vmatpush1.msra.mxu0 0.0
  %1905 = vmatprep.subr.mxu0 0.0
  %1906 = vmatpush1.msra.mxu0 0.0
  %1907 = vmatprep.subr.mxu0 0.0
  %1908 = vmatpush1.msra.mxu0 0.0
  %1909 = vmatprep.mubr.f32.mxu0 0.0
  %1910 = vmatmul.mubr.f32.gmra.mrb[0].mxu0 %v1843
  %v1911 = vpop.f32.mrb[0].mxu0
  %v1912 = vadd.f32 0.0, %v1911
  %v1913 = vpop.f32.mrb[0].mxu0
  %1914 = vdwg.mxu0
  %v1915 = vadd.f32 %v1842, %v1912
  %v1916 = vxor.u32 %v1915, 2147483648
  %v1917 = vmul.f32 %v1916, 1.442695
  %v1918 = vpow.pop %v1917
  %v1919 = vadd.f32 %v1918, 1.0
  %v1920 = vrcp.pop %v1919
  %v1921 = vmul.f32 1.0, %v1920
  %v1922 = vadd.f32 %v1912, %v345
  %1924 = vrot.lane.b32.xlu0 %v1922, 64
  %v1925 = vpop.permute.xlu0 %1924
  %v1927 = vmul.f32 %v1921, %v1925
  %1929 = vrot.lane.b32.xlu0 %v1927, 64
  %v1930 = vpop.permute.xlu0 %1929
  %v1932 = vadd.f32 %v1842, %v1930
  %v1933 = vtanh.pop %v1932
  %v1934 = vsub.f32 1.0, %v1921
  %1936 = vrot.lane.b32.xlu0 %v1933, 96
  %v1937 = vpop.permute.xlu0 %1936
  %v1939 = vmul.f32 %v1934, %v1937
  %v1940 = vmul.f32 %v1921, %v1836
  %v1941 = vadd.f32 %v1939, %v1940
  %1943 = vrot.lane.b32.xlu0 %v1941, 96
  %v1944 = vpop.permute.xlu0 %1943
  %1946 = vst.msk [vmem:[#allocation3 + $0x78] sm:$0xff] %vm262, %v1944
  %v1947 = vld [vmem:[#allocation3] sm:$0xff]
  %v1948 = vld [vmem:[#allocation3 + $0x8] sm:$0xff]
  %v1949 = vld [vmem:[#allocation3 + $0x10] sm:$0xff]
  %v1950 = vld [vmem:[#allocation3 + $0x18] sm:$0xff]
  %v1951 = vld [vmem:[#allocation3 + $0x20] sm:$0xff]
  %v1952 = vld [vmem:[#allocation3 + $0x28] sm:$0xff]
  %v1953 = vld [vmem:[#allocation3 + $0x30] sm:$0xff]
  %v1954 = vld [vmem:[#allocation3 + $0x38] sm:$0xff]
  %v1955 = vld [vmem:[#allocation3 + $0x40] sm:$0xff]
  %v1956 = vld [vmem:[#allocation3 + $0x48] sm:$0xff]
  %v1957 = vld [vmem:[#allocation3 + $0x50] sm:$0xff]
  %v1958 = vld [vmem:[#allocation3 + $0x58] sm:$0xff]
  %v1959 = vld [vmem:[#allocation3 + $0x60] sm:$0xff]
  %v1960 = vld [vmem:[#allocation3 + $0x68] sm:$0xff]
  %v1961 = vld [vmem:[#allocation3 + $0x70] sm:$0xff]
  %v1962 = vld [vmem:[#allocation3 + $0x78] sm:$0xff]
  %v1963 = vlaneseq
  %v1964 = vshrl.u32 %v1963, 7
  %v1965 = vsub.s32 0, %v1964
  %v1966 = vrot.slane %v29, %v1965
  %v1968 = vsel %vm262, %v1947, 0
  %v1971 = vsel %vm262, %v1948, 0
  %v1974 = vsel %vm262, %v1949, 0
  %v1977 = vsel %vm262, %v1950, 0
  %v1980 = vsel %vm262, %v1951, 0
  %v1983 = vsel %vm262, %v1952, 0
  %v1986 = vsel %vm262, %v1953, 0
  %v1989 = vsel %vm262, %v1954, 0
  %v1992 = vsel %vm262, %v1955, 0
  %v1995 = vsel %vm262, %v1956, 0
  %v1998 = vsel %vm262, %v1957, 0
  %v2001 = vsel %vm262, %v1958, 0
  %v2004 = vsel %vm262, %v1959, 0
  %v2007 = vsel %vm262, %v1960, 0
  %v2010 = vsel %vm262, %v1961, 0
  %v2013 = vsel %vm262, %v1962, 0
  %2015 = vmatprep.subr.mxu0 0.0
  %2016 = vmatpush1.msra.mxu0 %v19
  %2017 = vmatprep.subr.mxu0 0.0
  %2018 = vmatpush1.msra.mxu0 %v20
  %2019 = vmatprep.subr.mxu0 0.0
  %2020 = vmatpush1.msra.mxu0 %v21
  %2021 = vmatprep.subr.mxu0 0.0
  %2022 = vmatpush1.msra.mxu0 %v22
  %2023 = vmatprep.subr.mxu0 0.0
  %2024 = vmatpush1.msra.mxu0 0.0
  %2025 = vmatprep.subr.mxu0 0.0
  %2026 = vmatpush1.msra.mxu0 0.0
  %2027 = vmatprep.subr.mxu0 0.0
  %2028 = vmatpush1.msra.mxu0 0.0
  %2029 = vmatprep.subr.mxu0 0.0
  %2030 = vmatpush1.msra.mxu0 0.0
  %2031 = vmatprep.subr.mxu0 0.0
  %2032 = vmatpush1.msra.mxu0 0.0
  %2033 = vmatprep.subr.mxu0 0.0
  %2034 = vmatpush1.msra.mxu0 0.0
  %2035 = vmatprep.subr.mxu0 0.0
  %2036 = vmatpush1.msra.mxu0 0.0
  %2037 = vmatprep.subr.mxu0 0.0
  %2038 = vmatpush1.msra.mxu0 0.0
  %2039 = vmatprep.subr.mxu0 0.0
  %2040 = vmatpush1.msra.mxu0 0.0
  %2041 = vmatprep.subr.mxu0 0.0
  %2042 = vmatpush1.msra.mxu0 0.0
  %2043 = vmatprep.subr.mxu0 0.0
  %2044 = vmatpush1.msra.mxu0 0.0
  %2045 = vmatprep.subr.mxu0 0.0
  %2046 = vmatpush1.msra.mxu0 0.0
  %2047 = vmatprep.subr.mxu0 0.0
  %2048 = vmatpush1.msra.mxu0 0.0
  %2049 = vmatprep.subr.mxu0 0.0
  %2050 = vmatpush1.msra.mxu0 0.0
  %2051 = vmatprep.subr.mxu0 0.0
  %2052 = vmatpush1.msra.mxu0 0.0
  %2053 = vmatprep.subr.mxu0 0.0
  %2054 = vmatpush1.msra.mxu0 0.0
  %2055 = vmatprep.subr.mxu0 0.0
  %2056 = vmatpush1.msra.mxu0 0.0
  %2057 = vmatprep.subr.mxu0 0.0
  %2058 = vmatpush1.msra.mxu0 0.0
  %2059 = vmatprep.subr.mxu0 0.0
  %2060 = vmatpush1.msra.mxu0 0.0
  %2061 = vmatprep.subr.mxu0 0.0
  %2062 = vmatpush1.msra.mxu0 0.0
  %2063 = vmatprep.subr.mxu0 0.0
  %2064 = vmatpush1.msra.mxu0 0.0
  %2065 = vmatprep.subr.mxu0 0.0
  %2066 = vmatpush1.msra.mxu0 0.0
  %2067 = vmatprep.subr.mxu0 0.0
  %2068 = vmatpush1.msra.mxu0 0.0
  %2069 = vmatprep.subr.mxu0 0.0
  %2070 = vmatpush1.msra.mxu0 0.0
  %2071 = vmatprep.subr.mxu0 0.0
  %2072 = vmatpush1.msra.mxu0 0.0
  %2073 = vmatprep.subr.mxu0 0.0
  %2074 = vmatpush1.msra.mxu0 0.0
  %2075 = vmatprep.subr.mxu0 0.0
  %2076 = vmatpush1.msra.mxu0 0.0
  %2077 = vmatprep.subr.mxu0 0.0
  %2078 = vmatpush1.msra.mxu0 0.0
  %2079 = vmatprep.mubr.f32.mxu0 0.0
  %2080 = vmatmul.mubr.f32.gmra.mrb[0].mxu0 %v1968
  %v2081 = vpop.f32.mrb[0].mxu0
  %v2082 = vadd.f32 %v1966, %v2081
  %v2083 = vpop.f32.mrb[0].mxu0
  %2084 = vmatprep.mubr.f32.mxu0 0.0
  %2085 = vmatmul.mubr.f32.gmra.mrb[0].mxu0 %v1971
  %v2086 = vpop.f32.mrb[0].mxu0
  %v2087 = vadd.f32 %v1966, %v2086
  %v2088 = vpop.f32.mrb[0].mxu0
  %2089 = vmatprep.mubr.f32.mxu0 0.0
  %2090 = vmatmul.mubr.f32.gmra.mrb[0].mxu0 %v1974
  %v2091 = vpop.f32.mrb[0].mxu0
  %v2092 = vadd.f32 %v1966, %v2091
  %v2093 = vpop.f32.mrb[0].mxu0
  %2094 = vmatprep.mubr.f32.mxu0 0.0
  %2095 = vmatmul.mubr.f32.gmra.mrb[0].mxu0 %v1977
  %v2096 = vpop.f32.mrb[0].mxu0
  %v2097 = vadd.f32 %v1966, %v2096
  %v2098 = vpop.f32.mrb[0].mxu0
  %2099 = vmatprep.mubr.f32.mxu0 0.0
  %2100 = vmatmul.mubr.f32.gmra.mrb[0].mxu0 %v1980
  %v2101 = vpop.f32.mrb[0].mxu0
  %v2102 = vadd.f32 %v1966, %v2101
  %v2103 = vpop.f32.mrb[0].mxu0
  %2104 = vmatprep.mubr.f32.mxu0 0.0
  %2105 = vmatmul.mubr.f32.gmra.mrb[0].mxu0 %v1983
  %v2106 = vpop.f32.mrb[0].mxu0
  %v2107 = vadd.f32 %v1966, %v2106
  %v2108 = vpop.f32.mrb[0].mxu0
  %2109 = vmatprep.mubr.f32.mxu0 0.0
  %2110 = vmatmul.mubr.f32.gmra.mrb[0].mxu0 %v1986
  %v2111 = vpop.f32.mrb[0].mxu0
  %v2112 = vadd.f32 %v1966, %v2111
  %v2113 = vpop.f32.mrb[0].mxu0
  %2114 = vmatprep.mubr.f32.mxu0 0.0
  %2115 = vmatmul.mubr.f32.gmra.mrb[0].mxu0 %v1989
  %v2116 = vpop.f32.mrb[0].mxu0
  %v2117 = vadd.f32 %v1966, %v2116
  %v2118 = vpop.f32.mrb[0].mxu0
  %2119 = vmatprep.mubr.f32.mxu0 0.0
  %2120 = vmatmul.mubr.f32.gmra.mrb[0].mxu0 %v1992
  %v2121 = vpop.f32.mrb[0].mxu0
  %v2122 = vadd.f32 %v1966, %v2121
  %v2123 = vpop.f32.mrb[0].mxu0
  %2124 = vmatprep.mubr.f32.mxu0 0.0
  %2125 = vmatmul.mubr.f32.gmra.mrb[0].mxu0 %v1995
  %v2126 = vpop.f32.mrb[0].mxu0
  %v2127 = vadd.f32 %v1966, %v2126
  %v2128 = vpop.f32.mrb[0].mxu0
  %2129 = vmatprep.mubr.f32.mxu0 0.0
  %2130 = vmatmul.mubr.f32.gmra.mrb[0].mxu0 %v1998
  %v2131 = vpop.f32.mrb[0].mxu0
  %v2132 = vadd.f32 %v1966, %v2131
  %v2133 = vpop.f32.mrb[0].mxu0
  %2134 = vmatprep.mubr.f32.mxu0 0.0
  %2135 = vmatmul.mubr.f32.gmra.mrb[0].mxu0 %v2001
  %v2136 = vpop.f32.mrb[0].mxu0
  %v2137 = vadd.f32 %v1966, %v2136
  %v2138 = vpop.f32.mrb[0].mxu0
  %2139 = vmatprep.mubr.f32.mxu0 0.0
  %2140 = vmatmul.mubr.f32.gmra.mrb[0].mxu0 %v2004
  %v2141 = vpop.f32.mrb[0].mxu0
  %v2142 = vadd.f32 %v1966, %v2141
  %v2143 = vpop.f32.mrb[0].mxu0
  %2144 = vmatprep.mubr.f32.mxu0 0.0
  %2145 = vmatmul.mubr.f32.gmra.mrb[0].mxu0 %v2007
  %v2146 = vpop.f32.mrb[0].mxu0
  %v2147 = vadd.f32 %v1966, %v2146
  %v2148 = vpop.f32.mrb[0].mxu0
  %2149 = vmatprep.mubr.f32.mxu0 0.0
  %2150 = vmatmul.mubr.f32.gmra.mrb[0].mxu0 %v2010
  %v2151 = vpop.f32.mrb[0].mxu0
  %v2152 = vadd.f32 %v1966, %v2151
  %v2153 = vpop.f32.mrb[0].mxu0
  %2154 = vmatprep.mubr.f32.mxu0 0.0
  %2155 = vmatmul.mubr.f32.gmra.mrb[0].mxu0 %v2013
  %v2156 = vpop.f32.mrb[0].mxu0
  %v2157 = vadd.f32 %v1966, %v2156
  %v2158 = vpop.f32.mrb[0].mxu0
  %2159 = vdwg.mxu0
  %2160 = vst.msk [vmem:[%s3] sm:$0xff] %vm50, %v2082
  %2161 = vst.msk [vmem:[%s3 + $0x8] sm:$0xff] %vm50, %v2087
  %2162 = vst.msk [vmem:[%s3 + $0x10] sm:$0xff] %vm50, %v2092
  %2163 = vst.msk [vmem:[%s3 + $0x18] sm:$0xff] %vm50, %v2097
  %2164 = vst.msk [vmem:[%s3 + $0x20] sm:$0xff] %vm50, %v2102
  %2165 = vst.msk [vmem:[%s3 + $0x28] sm:$0xff] %vm50, %v2107
  %2166 = vst.msk [vmem:[%s3 + $0x30] sm:$0xff] %vm50, %v2112
  %2167 = vst.msk [vmem:[%s3 + $0x38] sm:$0xff] %vm50, %v2117
  %2168 = vst.msk [vmem:[%s3 + $0x40] sm:$0xff] %vm50, %v2122
  %2169 = vst.msk [vmem:[%s3 + $0x48] sm:$0xff] %vm50, %v2127
  %2170 = vst.msk [vmem:[%s3 + $0x50] sm:$0xff] %vm50, %v2132
  %2171 = vst.msk [vmem:[%s3 + $0x58] sm:$0xff] %vm50, %v2137
  %2172 = vst.msk [vmem:[%s3 + $0x60] sm:$0xff] %vm50, %v2142
  %2173 = vst.msk [vmem:[%s3 + $0x68] sm:$0xff] %vm50, %v2147
  %2174 = vst.msk [vmem:[%s3 + $0x70] sm:$0xff] %vm50, %v2152
  %2175 = vst.msk [vmem:[%s3 + $0x78] sm:$0xff] %vm50, %v2157
  // Predicated region
  $region14: #{gru_fc_pallas.1} parent=0 // pred_check
    _
  $region15: #{gru_fc_pallas.1} parent=0 // pred_check_branch
    %2177 = sbr.rel (0) target = $region17
  $region16: #{gru_fc_pallas.1} parent=0 // pred_region
    _
  $region17: #{gru_fc_pallas.1} parent=0 // pred_fallthru
    _
  // Predicated region
  $region18: #{gru_fc_pallas.1} parent=0 // pred_check
    _
  $region19: #{gru_fc_pallas.1} parent=0 // pred_check_branch
    %2179 = sbr.rel (0) target = $region21
  $region20: #{gru_fc_pallas.1} parent=0 // pred_region
    _
  $region21: #{gru_fc_pallas.1} parent=0 // pred_fallthru
    _

</llo_original>
